<compile_context>
chip_gen: v6e
topology: v6e:2x2x1
jax: 0.10.0
libtpu: 0.0.40
codegen_flags: <defaults>
</compile_context>

<pallas_src>
import functools

import jax
import jax.numpy as jnp
from jax.experimental import pallas as pl
from jax.experimental.pallas import tpu as pltpu

LANE = 128            # feature dims padded to a multiple of this (lane-dense)
TILE_M = 128          # node-row tile of adj / output
TILE_K = 128          # reduction tile (adj columns / xw rows)
VMEM_LIMIT = 32 * 1024 * 1024


def _round_up(v, m):
    return ((v + m - 1) // m) * m


def _pad2d(a, rows, cols):
    r, c = a.shape
    return jnp.pad(a, ((0, rows - r), (0, cols - c)))


# ----------------------------------------------------------------------------
# Kernel 1: xw = x @ W   (row-tiled; W resident in VMEM)
# ----------------------------------------------------------------------------
def _xw_kernel(x_ref, w_ref, o_ref):
    o_ref[...] = jnp.dot(x_ref[...], w_ref[...],
                         preferred_element_type=jnp.float32)


# ----------------------------------------------------------------------------
# Kernel 2: out = act(adj @ xw + b)
#   grid = (row tiles, reduction tiles); accumulate in VMEM scratch; bias and
#   activation applied only on the last reduction step (finalize).
# ----------------------------------------------------------------------------
def _propagate_kernel(adj_ref, xw_ref, b_ref, o_ref, acc_ref, *, apply_act):
    k = pl.program_id(1)

    @pl.when(k == 0)
    def _():
        acc_ref[...] = jnp.zeros_like(acc_ref)

    acc_ref[...] += jnp.dot(adj_ref[...], xw_ref[...],
                            preferred_element_type=jnp.float32)

    @pl.when(k == pl.num_programs(1) - 1)
    def _():
        out = acc_ref[...] + b_ref[...]
        if apply_act:
            out = jnp.maximum(out, 0.0)   # ReLU
        o_ref[...] = out.astype(o_ref.dtype)


def dhgconv_layer(x_p, adj_p, w_p, b_p, apply_act, *, tm=TILE_M, tk=TILE_K):
    """One DHGConv layer on padded operands: act(adj_p @ (x_p @ w_p) + b_p)."""
    n_pad, f_in_pad = x_p.shape
    f_out_pad = w_p.shape[1]
    assert n_pad % tm == 0 and n_pad % tk == 0

    # Stage 1: xw = x @ W (done once per layer, not per adjacency tile).
    xw = pl.pallas_call(
        _xw_kernel,
        out_shape=jax.ShapeDtypeStruct((n_pad, f_out_pad), jnp.float32),
        grid=(n_pad // tm,),
        in_specs=[
            pl.BlockSpec((tm, f_in_pad), lambda i: (i, 0)),
            pl.BlockSpec((f_in_pad, f_out_pad), lambda i: (0, 0)),
        ],
        out_specs=pl.BlockSpec((tm, f_out_pad), lambda i: (i, 0)),
        compiler_params=pltpu.CompilerParams(
            dimension_semantics=("parallel",),
            vmem_limit_bytes=VMEM_LIMIT,
        ),
    )(x_p, w_p)

    # Stage 2: out = act(adj @ xw + b), tiled reduction over adj columns.
    kernel = functools.partial(_propagate_kernel, apply_act=apply_act)
    return pl.pallas_call(
        kernel,
        out_shape=jax.ShapeDtypeStruct((n_pad, f_out_pad), jnp.float32),
        grid=(n_pad // tm, n_pad // tk),
        in_specs=[
            pl.BlockSpec((tm, tk), lambda i, k: (i, k)),           # adj tile
            pl.BlockSpec((tk, f_out_pad), lambda i, k: (k, 0)),    # xw tile
            pl.BlockSpec((1, f_out_pad), lambda i, k: (0, 0)),     # bias
        ],
        out_specs=pl.BlockSpec((tm, f_out_pad), lambda i, k: (i, 0)),
        scratch_shapes=[pltpu.VMEM((tm, f_out_pad), jnp.float32)],
        compiler_params=pltpu.CompilerParams(
            dimension_semantics=("parallel", "arbitrary"),
            vmem_limit_bytes=VMEM_LIMIT,
        ),
    )(adj_p, xw, b_p)


# ----------------------------------------------------------------------------
# DHGCN: stack of DHGConv layers, ReLU between all but the last.
# ----------------------------------------------------------------------------
def init_dhgcn_params(key, input_size, hidden_size, output_size, num_layers):
    """Deterministic parameter init matching DHGCN.__init__ layer shapes."""
    sizes = [input_size] + [hidden_size] * (num_layers - 1) + [output_size]
    params = []
    for lid in range(num_layers):
        f_in, f_out = sizes[lid], sizes[lid + 1]
        key, wk, bk = jax.random.split(key, 3)
        scale = 1.0 / jnp.sqrt(jnp.float32(f_in))
        w = jax.random.uniform(wk, (f_in, f_out), jnp.float32, -scale, scale)
        bvec = jax.random.uniform(bk, (f_out,), jnp.float32, -scale, scale)
        params.append((w, bvec))
    return params


def dhgcn_forward(x, adj, params):
    """h = x; for each layer: h = adj @ (h @ W) + b; ReLU between layers."""
    n, f_in = x.shape
    out_size = params[-1][0].shape[1]
    num_layers = len(params)

    # Pad node axis to the tile size and feature axes to lane width.
    # Zero padding is exact: padded adj columns are zero so padded node rows
    # never contaminate real rows; padded feature columns stay zero because the
    # corresponding W columns and b entries are zero.
    n_pad = _round_up(n, max(TILE_M, TILE_K))
    adj_p = _pad2d(adj, n_pad, n_pad)
    h = _pad2d(x, n_pad, _round_up(f_in, LANE))

    for i, (w, bvec) in enumerate(params):
        f_i, f_o = w.shape
        w_p = _pad2d(w, _round_up(f_i, LANE), _round_up(f_o, LANE))
        b_p = _pad2d(bvec.reshape(1, f_o), 1, _round_up(f_o, LANE))
        h = dhgconv_layer(h, adj_p, w_p, b_p, apply_act=(i < num_layers - 1))

    return h[:n, :out_size]


# ----------------------------------------------------------------------------
if __name__ == "__main__":
    # Small synthetic graph: 300 nodes (pads to 384 -> 3x3 propagation grid),
    # input 8 features, hidden 32, output 8, 3 layers.
    N = 300
    INPUT_SIZE = 8
    HIDDEN_SIZE = 32
    OUTPUT_SIZE = 8
    NUM_LAYERS = 3

    key = jax.random.PRNGKey(0)
    key, xk, ak, pk = jax.random.split(key, 4)

    x = jax.random.normal(xk, (N, INPUT_SIZE), jnp.float32)

    # Dense symmetric adjacency with self-loops, row-normalized.
    a = (jax.random.uniform(ak, (N, N)) < 0.05).astype(jnp.float32)
    a = jnp.maximum(a, a.T)
    a = a + jnp.eye(N, dtype=jnp.float32)
    adj = a / jnp.sum(a, axis=1, keepdims=True)

    params = init_dhgcn_params(pk, INPUT_SIZE, HIDDEN_SIZE, OUTPUT_SIZE,
                               NUM_LAYERS)

    out = jax.jit(dhgcn_forward)(x, adj, params)
    out = jax.block_until_ready(out)

    # Pure-JAX reference of the same math (unpadded).
    h_ref = x
    for i, (w, bvec) in enumerate(params):
        h_ref = adj @ (h_ref @ w) + bvec[None, :]
        if i < NUM_LAYERS - 1:
            h_ref = jnp.maximum(h_ref, 0.0)

    assert out.shape == (N, OUTPUT_SIZE)
    assert jnp.allclose(out, h_ref, atol=1e-3, rtol=1e-3), float(
        jnp.max(jnp.abs(out - h_ref)))

    print("KERNEL_OK")
</pallas_src>

<mosaic_0001>
module attributes {stable_mosaic.version = 11 : i64} {
  func.func @_propagate_kernel(%arg0: i32, %arg1: i32, %arg2: memref<128x128xf32, #tpu.memory_space<vmem>>, %arg3: memref<128x128xf32, #tpu.memory_space<vmem>>, %arg4: memref<1x128xf32, #tpu.memory_space<vmem>>, %arg5: memref<128x128xf32, #tpu.memory_space<vmem>>, %arg6: memref<128x128xf32, #tpu.memory_space<vmem>>) attributes {dimension_semantics = [#tpu.dimension_semantics<parallel>, #tpu.dimension_semantics<arbitrary>], iteration_bounds = array<i64: 3, 3>, scalar_prefetch = 0 : i64, scratch_operands = 1 : i64, tpu.core_type = #tpu.core_type<tc>, window_params = [{transform_indices = @transform_0, window_bounds = array<i64: 128, 128>}, {transform_indices = @transform_1, window_bounds = array<i64: 128, 128>}, {pipeline_mode = #tpu.pipeline_mode<synchronous>, transform_indices = @transform_2, window_bounds = array<i64: 1, 128>}, {transform_indices = @transform_3, window_bounds = array<i64: 128, 128>}]} {
    %c0_i32 = arith.constant 0 : i32
    %0 = arith.cmpi eq, %arg1, %c0_i32 : i32
    %1 = arith.extui %0 : i1 to i32
    %c0_i32_0 = arith.constant 0 : i32
    %2 = arith.cmpi ne, %1, %c0_i32_0 : i32
    scf.if %2 {
      %cst_9 = arith.constant 0.000000e+00 : f32
      %12 = vector.broadcast %cst_9 : f32 to vector<128x128xf32>
      %c0_10 = arith.constant 0 : index
      %c0_11 = arith.constant 0 : index
      %13 = vector.load %arg6[%c0_10, %c0_11] : memref<128x128xf32, #tpu.memory_space<vmem>>, vector<128x128xf32>
      tpu.vector_store %arg6[%c0_10, %c0_11], %12 {strides = array<i32>} : memref<128x128xf32, #tpu.memory_space<vmem>>, vector<128x128xf32>,
    } else {
    }
    %c0 = arith.constant 0 : index
    %c0_1 = arith.constant 0 : index
    %3 = vector.load %arg6[%c0, %c0_1] : memref<128x128xf32, #tpu.memory_space<vmem>>, vector<128x128xf32>
    %c0_2 = arith.constant 0 : index
    %c0_3 = arith.constant 0 : index
    %4 = vector.load %arg2[%c0_2, %c0_3] : memref<128x128xf32, #tpu.memory_space<vmem>>, vector<128x128xf32>
    %c0_4 = arith.constant 0 : index
    %c0_5 = arith.constant 0 : index
    %5 = vector.load %arg3[%c0_4, %c0_5] : memref<128x128xf32, #tpu.memory_space<vmem>>, vector<128x128xf32>
    %cst = arith.constant dense<0.000000e+00> : vector<128x128xf32>
    %6 = tpu.matmul %4, %5, %cst {dimension_numbers = #tpu.dot_dimension_numbers<[1], [0], [0], [1], [0, 0, 1, 1], [], []>} : vector<128x128xf32>, vector<128x128xf32>, vector<128x128xf32> -> vector<128x128xf32>
    %7 = arith.addf %3, %6 : vector<128x128xf32>
    %c0_6 = arith.constant 0 : index
    %c0_7 = arith.constant 0 : index
    %8 = vector.load %arg6[%c0_6, %c0_7] : memref<128x128xf32, #tpu.memory_space<vmem>>, vector<128x128xf32>
    tpu.vector_store %arg6[%c0_6, %c0_7], %7 {strides = array<i32>} : memref<128x128xf32, #tpu.memory_space<vmem>>, vector<128x128xf32>,
    %c2_i32 = arith.constant 2 : i32
    %9 = arith.cmpi eq, %arg1, %c2_i32 : i32
    %10 = arith.extui %9 : i1 to i32
    %c0_i32_8 = arith.constant 0 : i32
    %11 = arith.cmpi ne, %10, %c0_i32_8 : i32
    scf.if %11 {
      %c0_9 = arith.constant 0 : index
      %c0_10 = arith.constant 0 : index
      %12 = vector.load %arg6[%c0_9, %c0_10] : memref<128x128xf32, #tpu.memory_space<vmem>>, vector<128x128xf32>
      %c0_11 = arith.constant 0 : index
      %c0_12 = arith.constant 0 : index
      %13 = vector.load %arg4[%c0_11, %c0_12] : memref<1x128xf32, #tpu.memory_space<vmem>>, vector<1x128xf32>
      %14 = vector.broadcast %13 : vector<1x128xf32> to vector<128x128xf32>
      %15 = arith.addf %12, %14 : vector<128x128xf32>
      %cst_13 = arith.constant 0.000000e+00 : f32
      %16 = vector.broadcast %cst_13 : f32 to vector<128x128xf32>
      %17 = arith.maximumf %15, %16 : vector<128x128xf32>
      %c0_14 = arith.constant 0 : index
      %c0_15 = arith.constant 0 : index
      %18 = vector.load %arg5[%c0_14, %c0_15] : memref<128x128xf32, #tpu.memory_space<vmem>>, vector<128x128xf32>
      tpu.vector_store %arg5[%c0_14, %c0_15], %17 {strides = array<i32>} : memref<128x128xf32, #tpu.memory_space<vmem>>, vector<128x128xf32>,
    } else {
    }
    return
  }
  func.func @transform_0(%arg0: i32, %arg1: i32) -> (i32, i32) {
    %c0_i32 = arith.constant 0 : i32
    return %arg0, %arg1 : i32, i32
  }
  func.func @transform_1(%arg0: i32, %arg1: i32) -> (i32, i32) {
    %c0_i32 = arith.constant 0 : i32
    %c0_i32_0 = arith.constant 0 : i32
    return %arg1, %c0_i32 : i32, i32
  }
  func.func @transform_2(%arg0: i32, %arg1: i32) -> (i32, i32) {
    %c0_i32 = arith.constant 0 : i32
    %c0_i32_0 = arith.constant 0 : i32
    %c0_i32_1 = arith.constant 0 : i32
    return %c0_i32, %c0_i32_0 : i32, i32
  }
  func.func @transform_3(%arg0: i32, %arg1: i32) -> (i32, i32) {
    %c0_i32 = arith.constant 0 : i32
    %c0_i32_0 = arith.constant 0 : i32
    return %arg0, %c0_i32 : i32, i32
  }
}

module attributes {stable_mosaic.version = 11 : i64} {
  func.func @_xw_kernel(%arg0: i32, %arg1: memref<128x128xf32, #tpu.memory_space<vmem>>, %arg2: memref<128x128xf32, #tpu.memory_space<vmem>>, %arg3: memref<128x128xf32, #tpu.memory_space<vmem>>) attributes {dimension_semantics = [#tpu.dimension_semantics<parallel>], iteration_bounds = array<i64: 3>, scalar_prefetch = 0 : i64, scratch_operands = 0 : i64, tpu.core_type = #tpu.core_type<tc>, window_params = [{transform_indices = @transform_0, window_bounds = array<i64: 128, 128>}, {pipeline_mode = #tpu.pipeline_mode<synchronous>, transform_indices = @transform_1, window_bounds = array<i64: 128, 128>}, {transform_indices = @transform_2, window_bounds = array<i64: 128, 128>}]} {
    %c0 = arith.constant 0 : index
    %c0_0 = arith.constant 0 : index
    %0 = vector.load %arg1[%c0, %c0_0] : memref<128x128xf32, #tpu.memory_space<vmem>>, vector<128x128xf32>
    %c0_1 = arith.constant 0 : index
    %c0_2 = arith.constant 0 : index
    %1 = vector.load %arg2[%c0_1, %c0_2] : memref<128x128xf32, #tpu.memory_space<vmem>>, vector<128x128xf32>
    %cst = arith.constant dense<0.000000e+00> : vector<128x128xf32>
    %2 = tpu.matmul %0, %1, %cst {dimension_numbers = #tpu.dot_dimension_numbers<[1], [0], [0], [1], [0, 0, 1, 1], [], []>} : vector<128x128xf32>, vector<128x128xf32>, vector<128x128xf32> -> vector<128x128xf32>
    %c0_3 = arith.constant 0 : index
    %c0_4 = arith.constant 0 : index
    %3 = vector.load %arg3[%c0_3, %c0_4] : memref<128x128xf32, #tpu.memory_space<vmem>>, vector<128x128xf32>
    tpu.vector_store %arg3[%c0_3, %c0_4], %2 {strides = array<i32>} : memref<128x128xf32, #tpu.memory_space<vmem>>, vector<128x128xf32>,
    return
  }
  func.func @transform_0(%arg0: i32) -> (i32, i32) {
    %c0_i32 = arith.constant 0 : i32
    %c0_i32_0 = arith.constant 0 : i32
    return %arg0, %c0_i32 : i32, i32
  }
  func.func @transform_1(%arg0: i32) -> (i32, i32) {
    %c0_i32 = arith.constant 0 : i32
    %c0_i32_0 = arith.constant 0 : i32
    %c0_i32_1 = arith.constant 0 : i32
    return %c0_i32, %c0_i32_0 : i32, i32
  }
  func.func @transform_2(%arg0: i32) -> (i32, i32) {
    %c0_i32 = arith.constant 0 : i32
    %c0_i32_0 = arith.constant 0 : i32
    return %arg0, %c0_i32 : i32, i32
  }
}

module attributes {stable_mosaic.version = 11 : i64} {
  func.func @_propagate_kernel(%arg0: i32, %arg1: i32, %arg2: memref<128x128xf32, #tpu.memory_space<vmem>>, %arg3: memref<128x128xf32, #tpu.memory_space<vmem>>, %arg4: memref<1x128xf32, #tpu.memory_space<vmem>>, %arg5: memref<128x128xf32, #tpu.memory_space<vmem>>, %arg6: memref<128x128xf32, #tpu.memory_space<vmem>>) attributes {dimension_semantics = [#tpu.dimension_semantics<parallel>, #tpu.dimension_semantics<arbitrary>], iteration_bounds = array<i64: 3, 3>, scalar_prefetch = 0 : i64, scratch_operands = 1 : i64, tpu.core_type = #tpu.core_type<tc>, window_params = [{transform_indices = @transform_0, window_bounds = array<i64: 128, 128>}, {transform_indices = @transform_1, window_bounds = array<i64: 128, 128>}, {pipeline_mode = #tpu.pipeline_mode<synchronous>, transform_indices = @transform_2, window_bounds = array<i64: 1, 128>}, {transform_indices = @transform_3, window_bounds = array<i64: 128, 128>}]} {
    %c0_i32 = arith.constant 0 : i32
    %0 = arith.cmpi eq, %arg1, %c0_i32 : i32
    %1 = arith.extui %0 : i1 to i32
    %c0_i32_0 = arith.constant 0 : i32
    %2 = arith.cmpi ne, %1, %c0_i32_0 : i32
    scf.if %2 {
      %cst_9 = arith.constant 0.000000e+00 : f32
      %12 = vector.broadcast %cst_9 : f32 to vector<128x128xf32>
      %c0_10 = arith.constant 0 : index
      %c0_11 = arith.constant 0 : index
      %13 = vector.load %arg6[%c0_10, %c0_11] : memref<128x128xf32, #tpu.memory_space<vmem>>, vector<128x128xf32>
      tpu.vector_store %arg6[%c0_10, %c0_11], %12 {strides = array<i32>} : memref<128x128xf32, #tpu.memory_space<vmem>>, vector<128x128xf32>,
    } else {
    }
    %c0 = arith.constant 0 : index
    %c0_1 = arith.constant 0 : index
    %3 = vector.load %arg6[%c0, %c0_1] : memref<128x128xf32, #tpu.memory_space<vmem>>, vector<128x128xf32>
    %c0_2 = arith.constant 0 : index
    %c0_3 = arith.constant 0 : index
    %4 = vector.load %arg2[%c0_2, %c0_3] : memref<128x128xf32, #tpu.memory_space<vmem>>, vector<128x128xf32>
    %c0_4 = arith.constant 0 : index
    %c0_5 = arith.constant 0 : index
    %5 = vector.load %arg3[%c0_4, %c0_5] : memref<128x128xf32, #tpu.memory_space<vmem>>, vector<128x128xf32>
    %cst = arith.constant dense<0.000000e+00> : vector<128x128xf32>
    %6 = tpu.matmul %4, %5, %cst {dimension_numbers = #tpu.dot_dimension_numbers<[1], [0], [0], [1], [0, 0, 1, 1], [], []>} : vector<128x128xf32>, vector<128x128xf32>, vector<128x128xf32> -> vector<128x128xf32>
    %7 = arith.addf %3, %6 : vector<128x128xf32>
    %c0_6 = arith.constant 0 : index
    %c0_7 = arith.constant 0 : index
    %8 = vector.load %arg6[%c0_6, %c0_7] : memref<128x128xf32, #tpu.memory_space<vmem>>, vector<128x128xf32>
    tpu.vector_store %arg6[%c0_6, %c0_7], %7 {strides = array<i32>} : memref<128x128xf32, #tpu.memory_space<vmem>>, vector<128x128xf32>,
    %c2_i32 = arith.constant 2 : i32
    %9 = arith.cmpi eq, %arg1, %c2_i32 : i32
    %10 = arith.extui %9 : i1 to i32
    %c0_i32_8 = arith.constant 0 : i32
    %11 = arith.cmpi ne, %10, %c0_i32_8 : i32
    scf.if %11 {
      %c0_9 = arith.constant 0 : index
      %c0_10 = arith.constant 0 : index
      %12 = vector.load %arg6[%c0_9, %c0_10] : memref<128x128xf32, #tpu.memory_space<vmem>>, vector<128x128xf32>
      %c0_11 = arith.constant 0 : index
      %c0_12 = arith.constant 0 : index
      %13 = vector.load %arg4[%c0_11, %c0_12] : memref<1x128xf32, #tpu.memory_space<vmem>>, vector<1x128xf32>
      %14 = vector.broadcast %13 : vector<1x128xf32> to vector<128x128xf32>
      %15 = arith.addf %12, %14 : vector<128x128xf32>
      %c0_13 = arith.constant 0 : index
      %c0_14 = arith.constant 0 : index
      %16 = vector.load %arg5[%c0_13, %c0_14] : memref<128x128xf32, #tpu.memory_space<vmem>>, vector<128x128xf32>
      tpu.vector_store %arg5[%c0_13, %c0_14], %15 {strides = array<i32>} : memref<128x128xf32, #tpu.memory_space<vmem>>, vector<128x128xf32>,
    } else {
    }
    return
  }
  func.func @transform_0(%arg0: i32, %arg1: i32) -> (i32, i32) {
    %c0_i32 = arith.constant 0 : i32
    return %arg0, %arg1 : i32, i32
  }
  func.func @transform_1(%arg0: i32, %arg1: i32) -> (i32, i32) {
    %c0_i32 = arith.constant 0 : i32
    %c0_i32_0 = arith.constant 0 : i32
    return %arg1, %c0_i32 : i32, i32
  }
  func.func @transform_2(%arg0: i32, %arg1: i32) -> (i32, i32) {
    %c0_i32 = arith.constant 0 : i32
    %c0_i32_0 = arith.constant 0 : i32
    %c0_i32_1 = arith.constant 0 : i32
    return %c0_i32, %c0_i32_0 : i32, i32
  }
  func.func @transform_3(%arg0: i32, %arg1: i32) -> (i32, i32) {
    %c0_i32 = arith.constant 0 : i32
    %c0_i32_0 = arith.constant 0 : i32
    return %arg0, %c0_i32 : i32, i32
  }
}

</mosaic_0001>

<llo_original>
// kernel: dhgcn_forward.11
$region0: #{dhgcn_forward.11}
  #allocation0 [shape = 'u32[]', space=smem, size = 0x4, offset = 0x4, fixed_abs, tag = 'smem constant byte address 0x4 - core index']
  #allocation1 [shape = 'u32[144,128]{1,0:T(1,128)}', space=vmem, size = 0x12000, scoped, tag = 'internal scratch']
  #allocation2 [shape = 'f32[128,128]{1,0:T(8,128)}', space=vmem, size = 0x10000, scoped, tag = 'scratch operand']
  %s0 = inlined_call_operand.vmem [shape: f32[384,384], index: 0, kind: input, shape index: {}]
  %s1 = inlined_call_operand.vmem [shape: f32[384,128], index: 1, kind: input, shape index: {}]
  %s2 = inlined_call_operand.vmem [shape: f32[1,128], index: 2, kind: input, shape index: {}]
  %s3 = inlined_call_operand.vmem [shape: f32[384,128], index: 3, kind: output, shape index: {}]
  %s4 = sld [smem:[#allocation0]]
  $region91: #{dhgcn_forward.11} parent=0
    _
  %s6 = ssub.s32 1, %s4
  %s7 = scalar_select 0, %s6, %s4
  $region1: #{dhgcn_forward.11} parent=0
    #allocation3 [shape = 'u8[131072]{0}', space=vmem, size = 0x20000, scoped, tag = 'input window, operand 0']
    loop: start=0, step=1, limit=11
    $region2: #{dhgcn_forward.11} parent=1 // loop_pre_header
      _
    $region3: #{dhgcn_forward.11} parent=1 // loop_header
      %s9 = sphi 0, %s13
      %p10 = scmp.ge.s32.totalorder %s9, 11
      %s16 = sphi 0, %s28
      %s17 = sphi 0, %s24
      %s18 = sphi 0, %s16
      %s19 = sphi 0, %s17
      %s20 = sphi 0, %s18
      %s21 = sphi 0, %s19
      %s33 = sphi 0, %s35
      %s36 = sphi 0, %s33
      %s37 = sphi 0, %s36
      %s53 = sphi 0, %s37
      %s59 = sphi 0, %s61
      %s62 = sphi 0, %s59
      %s63 = sphi 0, %s62
      %s79 = sphi 0, %s63
      %s83 = sphi 0, %s83
      %s85 = sphi 0, %s83
      %s86 = sphi 0, %s85
      %s100 = sphi 0, %s86
      %s106 = sphi 0, %s108
      %s109 = sphi 0, %s106
      %s110 = sphi 0, %s109
      %s126 = sphi 0, %s110
    $region4: #{dhgcn_forward.11} parent=1 // loop_header_branch
      %12 = sbr.rel (%p10) target = $region8
    $region5: #{dhgcn_forward.11} parent=1 // loop_body
      %s14 = ssub.s32 %s9, 1
      %s15 = ssub.s32 %s9, 2
      %s22 = sadd.s32 1, %s17
      %p23 = scmp.ge.s32.totalorder %s22, 3
      %s24 = scalar_select %p23, 0, %s22
      %s25 = sadd.s32 1, %s16
      %s26 = scalar_select %p23, %s25, %s16
      %p27 = scmp.ge.s32.totalorder %s26, 3
      %s28 = scalar_select %p27, 0, %s26
      %s29 = ssub.s32 %s16, %s28
      %s30 = ssub.s32 %s17, %s24
      %s31 = sor.u32 %s29, %s30
      %p32 = scmp.eq.s32.totalorder %s31, 0
      %s34 = sadd.s32 %s33, 1
      %s35 = scalar_select %p32, %s33, %s34
      %p38 = pneg %p32
      %p39 = scmp.eq.s32.totalorder %s9, 8
      %p40 = por %p38, %p39
      %p41 = scmp.ne.s32.totalorder %s33, %s36
      %p42 = scmp.eq.s32.totalorder %s9, 0
      %p43 = por %p41, %p42
      %p44 = scmp.ne.s32.totalorder %s33, %s36
      %p45 = scmp.eq.s32.totalorder %s14, 8
      %p46 = por %p44, %p45
      %p47 = scmp.ne.s32.totalorder %s36, %s37
      %p48 = scmp.eq.s32.totalorder %s14, 0
      %p49 = por %p47, %p48
      %p50 = scmp.ne.s32.totalorder %s36, %s37
      %p51 = scmp.eq.s32.totalorder %s15, 8
      %p52 = por %p50, %p51
      %p54 = scmp.ne.s32.totalorder %s37, %s53
      %p55 = scmp.eq.s32.totalorder %s15, 0
      %p56 = por %p54, %p55
      %s57 = ssub.s32 %s17, %s24
      %p58 = scmp.eq.s32.totalorder %s57, 0
      %s60 = sadd.s32 %s59, 1
      %s61 = scalar_select %p58, %s59, %s60
      %p64 = pneg %p58
      %p65 = scmp.eq.s32.totalorder %s9, 8
      %p66 = por %p64, %p65
      %p67 = scmp.ne.s32.totalorder %s59, %s62
      %p68 = scmp.eq.s32.totalorder %s9, 0
      %p69 = por %p67, %p68
      %p70 = scmp.ne.s32.totalorder %s59, %s62
      %p71 = scmp.eq.s32.totalorder %s14, 8
      %p72 = por %p70, %p71
      %p73 = scmp.ne.s32.totalorder %s62, %s63
      %p74 = scmp.eq.s32.totalorder %s14, 0
      %p75 = por %p73, %p74
      %p76 = scmp.ne.s32.totalorder %s62, %s63
      %p77 = scmp.eq.s32.totalorder %s15, 8
      %p78 = por %p76, %p77
      %p80 = scmp.ne.s32.totalorder %s63, %s79
      %p81 = scmp.eq.s32.totalorder %s15, 0
      %p82 = por %p80, %p81
      %s84 = sadd.s32 %s83, 1
      %p87 = scmp.eq.s32.totalorder %s9, 8
      %p88 = scmp.ne.s32.totalorder %s83, %s85
      %p89 = scmp.eq.s32.totalorder %s9, 0
      %p90 = por %p88, %p89
      %p91 = scmp.ne.s32.totalorder %s83, %s85
      %p92 = scmp.eq.s32.totalorder %s14, 8
      %p93 = por %p91, %p92
      %p94 = scmp.ne.s32.totalorder %s85, %s86
      %p95 = scmp.eq.s32.totalorder %s14, 0
      %p96 = por %p94, %p95
      %p97 = scmp.ne.s32.totalorder %s85, %s86
      %p98 = scmp.eq.s32.totalorder %s15, 8
      %p99 = por %p97, %p98
      %p101 = scmp.ne.s32.totalorder %s86, %s100
      %p102 = scmp.eq.s32.totalorder %s15, 0
      %p103 = por %p101, %p102
      %s104 = ssub.s32 %s16, %s28
      %p105 = scmp.eq.s32.totalorder %s104, 0
      %s107 = sadd.s32 %s106, 1
      %s108 = scalar_select %p105, %s106, %s107
      %p111 = pneg %p105
      %p112 = scmp.eq.s32.totalorder %s9, 8
      %p113 = por %p111, %p112
      %p114 = scmp.ne.s32.totalorder %s106, %s109
      %p115 = scmp.eq.s32.totalorder %s9, 0
      %p116 = por %p114, %p115
      %p117 = scmp.ne.s32.totalorder %s106, %s109
      %p118 = scmp.eq.s32.totalorder %s14, 8
      %p119 = por %p117, %p118
      %p120 = scmp.ne.s32.totalorder %s109, %s110
      %p121 = scmp.eq.s32.totalorder %s14, 0
      %p122 = por %p120, %p121
      %p123 = scmp.ne.s32.totalorder %s109, %s110
      %p124 = scmp.eq.s32.totalorder %s15, 8
      %p125 = por %p123, %p124
      %p127 = scmp.ne.s32.totalorder %s110, %s126
      %p128 = scmp.eq.s32.totalorder %s15, 0
      %p129 = por %p127, %p128
      %p130 = scmp.le.s32.totalorder 1, %s9
      %p131 = scmp.lt.s32.totalorder %s9, 10
      %p132 = pnand %p130, %p131
      %p133 = pneg %p132
      // Predicated region
      $region9: #{dhgcn_forward.11} parent=5 // pred_check
        _
      $region10: #{dhgcn_forward.11} parent=5 // pred_check_branch
        %135 = sbr.rel (%p132) target = $region12
      $region11: #{dhgcn_forward.11} parent=5 // pred_region
        %s136 = ssub.s32 %s9, 1
        // Predicated region
        $region13: #{dhgcn_forward.11} parent=11 // pred_check
          %p137 = pneg %p96
        $region14: #{dhgcn_forward.11} parent=11 // pred_check_branch
          %139 = sbr.rel (%p137) target = $region16
        $region15: #{dhgcn_forward.11} parent=11 // pred_region
          _
        $region16: #{dhgcn_forward.11} parent=11 // pred_fallthru
          _
      $region12: #{dhgcn_forward.11} parent=5 // pred_fallthru
        _
      %p140 = scmp.lt.s32.totalorder %s9, 9
      // Predicated region
      $region17: #{dhgcn_forward.11} parent=5 // pred_check
        %p141 = pneg %p140
      $region18: #{dhgcn_forward.11} parent=5 // pred_check_branch
        %143 = sbr.rel (%p141) target = $region20
      $region19: #{dhgcn_forward.11} parent=5 // pred_region
        // Predicated region
        $region21: #{dhgcn_forward.11} parent=19 // pred_check
          %p144 = pneg %p43
        $region22: #{dhgcn_forward.11} parent=19 // pred_check_branch
          %146 = sbr.rel (%p144) target = $region24
        $region23: #{dhgcn_forward.11} parent=19 // pred_region
          %s147 = sand.u32 %s33, 1
          %s148 = sand.u32 %s33, 1
          %s149 = smul.addr %s148, 128
          %s150 = scalar_lea.vmem [#allocation3], %s149
          %s151 = smul.u32 16, %s16
          %s152 = smul.addr %s151, 3
          %s153 = sadd.s32 %s17, %s152
          %s154 = smul.addr %s153, 8
          %s155 = scalar_lea.vmem %s0, %s154
          // Predicated region
          $region25: #{dhgcn_forward.11} parent=23 // pred_check
            _
          $region26: #{dhgcn_forward.11} parent=23 // pred_check_branch
            %157 = sbr.rel (0) target = $region28
          $region27: #{dhgcn_forward.11} parent=23 // pred_region
            // Predicated region
            $region29: #{dhgcn_forward.11} parent=27 // pred_check
              _
            $region30: #{dhgcn_forward.11} parent=27 // pred_check_branch
              %159 = sbr.rel (0) target = $region32
            $region31: #{dhgcn_forward.11} parent=27 // pred_region
              // Predicated region
              $region44: #{dhgcn_forward.11} parent=31 // pred_check
                _
              $region45: #{dhgcn_forward.11} parent=31 // pred_check_branch
                %205 = sbr.rel (0) target = $region47
              $region46: #{dhgcn_forward.11} parent=31 // pred_region
                loop: start=0, step=1, limit=1
                $region48: #{dhgcn_forward.11} parent=46 // loop_pre_header
                  _
                $region49: #{dhgcn_forward.11} parent=46 // loop_header
                  %s207 = sphi 0, %s211
                  %p208 = scmp.ge.s32.totalorder %s207, 1
                  %s212 = sphi %s155, %s155
                  %s213 = sphi %s150, %s150
                $region50: #{dhgcn_forward.11} parent=46 // loop_header_branch
                  %210 = sbr.rel (%p208) target = $region54
                $region51: #{dhgcn_forward.11} parent=46 // loop_body
                  %v214 = vld [vmem:[%s212] sm:$0xff]
                  %215 = vst [vmem:[%s213] sm:$0xff] %v214
                  %v216 = vld [vmem:[%s212 + $0x18] sm:$0xff]
                  %217 = vst [vmem:[%s213 + $0x8] sm:$0xff] %v216
                  %v218 = vld [vmem:[%s212 + $0x30] sm:$0xff]
                  %219 = vst [vmem:[%s213 + $0x10] sm:$0xff] %v218
                  %v220 = vld [vmem:[%s212 + $0x48] sm:$0xff]
                  %221 = vst [vmem:[%s213 + $0x18] sm:$0xff] %v220
                  %v222 = vld [vmem:[%s212 + $0x60] sm:$0xff]
                  %223 = vst [vmem:[%s213 + $0x20] sm:$0xff] %v222
                  %v224 = vld [vmem:[%s212 + $0x78] sm:$0xff]
                  %225 = vst [vmem:[%s213 + $0x28] sm:$0xff] %v224
                  %v226 = vld [vmem:[%s212 + $0x90] sm:$0xff]
                  %227 = vst [vmem:[%s213 + $0x30] sm:$0xff] %v226
                  %v228 = vld [vmem:[%s212 + $0xa8] sm:$0xff]
                  %229 = vst [vmem:[%s213 + $0x38] sm:$0xff] %v228
                  %v230 = vld [vmem:[%s212 + $0xc0] sm:$0xff]
                  %231 = vst [vmem:[%s213 + $0x40] sm:$0xff] %v230
                  %v232 = vld [vmem:[%s212 + $0xd8] sm:$0xff]
                  %233 = vst [vmem:[%s213 + $0x48] sm:$0xff] %v232
                  %v234 = vld [vmem:[%s212 + $0xf0] sm:$0xff]
                  %235 = vst [vmem:[%s213 + $0x50] sm:$0xff] %v234
                  %v236 = vld [vmem:[%s212 + $0x108] sm:$0xff]
                  %237 = vst [vmem:[%s213 + $0x58] sm:$0xff] %v236
                  %v238 = vld [vmem:[%s212 + $0x120] sm:$0xff]
                  %239 = vst [vmem:[%s213 + $0x60] sm:$0xff] %v238
                  %v240 = vld [vmem:[%s212 + $0x138] sm:$0xff]
                  %241 = vst [vmem:[%s213 + $0x68] sm:$0xff] %v240
                  %v242 = vld [vmem:[%s212 + $0x150] sm:$0xff]
                  %243 = vst [vmem:[%s213 + $0x70] sm:$0xff] %v242
                  %v244 = vld [vmem:[%s212 + $0x168] sm:$0xff]
                  %245 = vst [vmem:[%s213 + $0x78] sm:$0xff] %v244
                $region52: #{dhgcn_forward.11} parent=46 // loop_footer
                  %s211 = sadd.s32 1, %s207
                $region53: #{dhgcn_forward.11} parent=46 // loop_footer_branch
                  %206 = sbr.rel target = $region49
                $region54: #{dhgcn_forward.11} parent=46 // loop_exit
                  _
              $region47: #{dhgcn_forward.11} parent=31 // pred_fallthru
                _
              // Predicated region
              $region55: #{dhgcn_forward.11} parent=31 // pred_check
                _
              $region56: #{dhgcn_forward.11} parent=31 // pred_check_branch
                %247 = sbr.rel target = $region58
              $region57: #{dhgcn_forward.11} parent=31 // pred_region
                _
              $region58: #{dhgcn_forward.11} parent=31 // pred_fallthru
                _
            $region32: #{dhgcn_forward.11} parent=27 // pred_fallthru
              _
            // Predicated region
            $region33: #{dhgcn_forward.11} parent=27 // pred_check
              _
            $region34: #{dhgcn_forward.11} parent=27 // pred_check_branch
              %161 = sbr.rel target = $region36
            $region35: #{dhgcn_forward.11} parent=27 // pred_region
              %s163 = ssub.s32 256, 1
              loop: start=0, step=1, limit=1
              $region37: #{dhgcn_forward.11} parent=35 // loop_pre_header
                _
              $region38: #{dhgcn_forward.11} parent=35 // loop_header
                %s165 = sphi 0, %s169
                %p166 = scmp.ge.s32.totalorder %s165, 1
                %s170 = sphi %s155, %s155
                %s171 = sphi %s150, %s150
              $region39: #{dhgcn_forward.11} parent=35 // loop_header_branch
                %168 = sbr.rel (%p166) target = $region43
              $region40: #{dhgcn_forward.11} parent=35 // loop_body
                %v172 = vld [vmem:[%s170] sm:%s163]
                %173 = vst [vmem:[%s171] sm:%s163] %v172
                %v174 = vld [vmem:[%s170 + $0x18] sm:%s163]
                %175 = vst [vmem:[%s171 + $0x8] sm:%s163] %v174
                %v176 = vld [vmem:[%s170 + $0x30] sm:%s163]
                %177 = vst [vmem:[%s171 + $0x10] sm:%s163] %v176
                %v178 = vld [vmem:[%s170 + $0x48] sm:%s163]
                %179 = vst [vmem:[%s171 + $0x18] sm:%s163] %v178
                %v180 = vld [vmem:[%s170 + $0x60] sm:%s163]
                %181 = vst [vmem:[%s171 + $0x20] sm:%s163] %v180
                %v182 = vld [vmem:[%s170 + $0x78] sm:%s163]
                %183 = vst [vmem:[%s171 + $0x28] sm:%s163] %v182
                %v184 = vld [vmem:[%s170 + $0x90] sm:%s163]
                %185 = vst [vmem:[%s171 + $0x30] sm:%s163] %v184
                %v186 = vld [vmem:[%s170 + $0xa8] sm:%s163]
                %187 = vst [vmem:[%s171 + $0x38] sm:%s163] %v186
                %v188 = vld [vmem:[%s170 + $0xc0] sm:%s163]
                %189 = vst [vmem:[%s171 + $0x40] sm:%s163] %v188
                %v190 = vld [vmem:[%s170 + $0xd8] sm:%s163]
                %191 = vst [vmem:[%s171 + $0x48] sm:%s163] %v190
                %v192 = vld [vmem:[%s170 + $0xf0] sm:%s163]
                %193 = vst [vmem:[%s171 + $0x50] sm:%s163] %v192
                %v194 = vld [vmem:[%s170 + $0x108] sm:%s163]
                %195 = vst [vmem:[%s171 + $0x58] sm:%s163] %v194
                %v196 = vld [vmem:[%s170 + $0x120] sm:%s163]
                %197 = vst [vmem:[%s171 + $0x60] sm:%s163] %v196
                %v198 = vld [vmem:[%s170 + $0x138] sm:%s163]
                %199 = vst [vmem:[%s171 + $0x68] sm:%s163] %v198
                %v200 = vld [vmem:[%s170 + $0x150] sm:%s163]
                %201 = vst [vmem:[%s171 + $0x70] sm:%s163] %v200
                %v202 = vld [vmem:[%s170 + $0x168] sm:%s163]
                %203 = vst [vmem:[%s171 + $0x78] sm:%s163] %v202
              $region41: #{dhgcn_forward.11} parent=35 // loop_footer
                %s169 = sadd.s32 1, %s165
              $region42: #{dhgcn_forward.11} parent=35 // loop_footer_branch
                %164 = sbr.rel target = $region38
              $region43: #{dhgcn_forward.11} parent=35 // loop_exit
                _
            $region36: #{dhgcn_forward.11} parent=27 // pred_fallthru
              _
          $region28: #{dhgcn_forward.11} parent=23 // pred_fallthru
            _
          %248 = vnop
        $region24: #{dhgcn_forward.11} parent=19 // pred_fallthru
          _
        // Predicated region
        $region59: #{dhgcn_forward.11} parent=19 // pred_check
          %p249 = pneg %p69
        $region60: #{dhgcn_forward.11} parent=19 // pred_check_branch
          %251 = sbr.rel (%p249) target = $region62
        $region61: #{dhgcn_forward.11} parent=19 // pred_region
          %s252 = smul.u32 16, %s17
          %p253 = scmp.lt.s32.totalorder %s252, 47
          %s254 = scalar_select %p253, %s252, 47
          %s255 = smul.addr %s254, 8
          %s256 = scalar_lea.vmem %s1, %s255
          %s257 = smul.u32 16, %s17
        $region62: #{dhgcn_forward.11} parent=19 // pred_fallthru
          _
      $region20: #{dhgcn_forward.11} parent=5 // pred_fallthru
        _
      %p258 = scmp.le.s32.totalorder 1, %s9
      %p259 = scmp.lt.s32.totalorder %s9, 10
      %p260 = pnand %p258, %p259
      %p261 = pneg %p260
      // Predicated region
      $region63: #{dhgcn_forward.11} parent=5 // pred_check
        _
      $region64: #{dhgcn_forward.11} parent=5 // pred_check_branch
        %263 = sbr.rel (%p260) target = $region66
      $region65: #{dhgcn_forward.11} parent=5 // pred_region
        %s264 = ssub.s32 %s9, 1
        %s265 = sand.u32 %s36, 1
        %s266 = sand.u32 %s36, 1
        %s267 = smul.addr %s266, 128
        %s268 = scalar_lea.vmem [#allocation3], %s267
        // Predicated region
        $region67: #{dhgcn_forward.11} parent=65 // pred_check
          %p269 = pneg %p49
        $region68: #{dhgcn_forward.11} parent=65 // pred_check_branch
          %271 = sbr.rel (%p269) target = $region70
        $region69: #{dhgcn_forward.11} parent=65 // pred_region
          _
        $region70: #{dhgcn_forward.11} parent=65 // pred_fallthru
          _
        %s272 = sand.u32 %s36, 1
        %s273 = sand.u32 %s36, 1
        %s274 = smul.addr %s273, 128
        %s275 = scalar_lea.vmem [#allocation3], %s274
        %p276 = pneg %p49
        %p277 = pneg %p46
        %s278 = smul.u32 16, %s19
        %p279 = scmp.lt.s32.totalorder %s278, 47
        %s280 = scalar_select %p279, %s278, 47
        %s281 = smul.addr %s280, 8
        %s282 = scalar_lea.vmem %s1, %s281
        %p283 = pneg %p75
        %p284 = pneg %p72
        %p285 = pneg %p96
        %p286 = pneg %p93
        %p287 = pneg %p122
        %p288 = pneg %p119
        %s289 = smul.u32 16, %s18
        %p290 = scmp.lt.s32.totalorder %s289, 47
        %s291 = scalar_select %p290, %s289, 47
        %s292 = smul.addr %s291, 8
        %s293 = scalar_lea.vmem %s3, %s292
        %s294 = smul.u32 16, %s18
        %s295 = smul.u32 16, %s19
        %p296 = scmp.lt.s32.totalorder %s295, 47
        %s297 = scalar_select %p296, %s295, 47
        %s298 = smul.addr %s297, 8
        %s299 = scalar_lea.vmem %s1, %s298
        %s300 = smul.u32 16, %s19
        %s301 = smul.u32 16, %s18
        %p302 = scmp.lt.s32.totalorder %s301, 47
        %s303 = scalar_select %p302, %s301, 47
        %s304 = smul.addr %s303, 8
        %s305 = scalar_lea.vmem %s3, %s304
        %s306 = smul.u32 16, %s18
        %p307 = scmp.eq.s32.totalorder %s19, 0
        // Predicated region
        $region71: #{dhgcn_forward.11} parent=65 // pred_check
          %p308 = pneg %p307
        $region72: #{dhgcn_forward.11} parent=65 // pred_check_branch
          %310 = sbr.rel (%p308) target = $region74
        $region73: #{dhgcn_forward.11} parent=65 // pred_region
          %311 = vst [vmem:[#allocation2] sm:$0xff] 0.0
          %312 = vst [vmem:[#allocation2 + $0x8] sm:$0xff] 0.0
          %313 = vst [vmem:[#allocation2 + $0x10] sm:$0xff] 0.0
          %314 = vst [vmem:[#allocation2 + $0x18] sm:$0xff] 0.0
          %315 = vst [vmem:[#allocation2 + $0x20] sm:$0xff] 0.0
          %316 = vst [vmem:[#allocation2 + $0x28] sm:$0xff] 0.0
          %317 = vst [vmem:[#allocation2 + $0x30] sm:$0xff] 0.0
          %318 = vst [vmem:[#allocation2 + $0x38] sm:$0xff] 0.0
          %319 = vst [vmem:[#allocation2 + $0x40] sm:$0xff] 0.0
          %320 = vst [vmem:[#allocation2 + $0x48] sm:$0xff] 0.0
          %321 = vst [vmem:[#allocation2 + $0x50] sm:$0xff] 0.0
          %322 = vst [vmem:[#allocation2 + $0x58] sm:$0xff] 0.0
          %323 = vst [vmem:[#allocation2 + $0x60] sm:$0xff] 0.0
          %324 = vst [vmem:[#allocation2 + $0x68] sm:$0xff] 0.0
          %325 = vst [vmem:[#allocation2 + $0x70] sm:$0xff] 0.0
          %326 = vst [vmem:[#allocation2 + $0x78] sm:$0xff] 0.0
        $region74: #{dhgcn_forward.11} parent=65 // pred_fallthru
          _
        %v327 = vld [vmem:[#allocation2] sm:$0xff]
        %v328 = vld [vmem:[#allocation2 + $0x8] sm:$0xff]
        %v329 = vld [vmem:[#allocation2 + $0x10] sm:$0xff]
        %v330 = vld [vmem:[#allocation2 + $0x18] sm:$0xff]
        %v331 = vld [vmem:[#allocation2 + $0x20] sm:$0xff]
        %v332 = vld [vmem:[#allocation2 + $0x28] sm:$0xff]
        %v333 = vld [vmem:[#allocation2 + $0x30] sm:$0xff]
        %v334 = vld [vmem:[#allocation2 + $0x38] sm:$0xff]
        %v335 = vld [vmem:[#allocation2 + $0x40] sm:$0xff]
        %v336 = vld [vmem:[#allocation2 + $0x48] sm:$0xff]
        %v337 = vld [vmem:[#allocation2 + $0x50] sm:$0xff]
        %v338 = vld [vmem:[#allocation2 + $0x58] sm:$0xff]
        %v339 = vld [vmem:[#allocation2 + $0x60] sm:$0xff]
        %v340 = vld [vmem:[#allocation2 + $0x68] sm:$0xff]
        %v341 = vld [vmem:[#allocation2 + $0x70] sm:$0xff]
        %v342 = vld [vmem:[#allocation2 + $0x78] sm:$0xff]
        %v343 = vld [vmem:[%s268] sm:$0xff]
        %v344 = vld [vmem:[%s268 + $0x8] sm:$0xff]
        %v345 = vld [vmem:[%s268 + $0x10] sm:$0xff]
        %v346 = vld [vmem:[%s268 + $0x18] sm:$0xff]
        %v347 = vld [vmem:[%s268 + $0x20] sm:$0xff]
        %v348 = vld [vmem:[%s268 + $0x28] sm:$0xff]
        %v349 = vld [vmem:[%s268 + $0x30] sm:$0xff]
        %v350 = vld [vmem:[%s268 + $0x38] sm:$0xff]
        %v351 = vld [vmem:[%s268 + $0x40] sm:$0xff]
        %v352 = vld [vmem:[%s268 + $0x48] sm:$0xff]
        %v353 = vld [vmem:[%s268 + $0x50] sm:$0xff]
        %v354 = vld [vmem:[%s268 + $0x58] sm:$0xff]
        %v355 = vld [vmem:[%s268 + $0x60] sm:$0xff]
        %v356 = vld [vmem:[%s268 + $0x68] sm:$0xff]
        %v357 = vld [vmem:[%s268 + $0x70] sm:$0xff]
        %v358 = vld [vmem:[%s268 + $0x78] sm:$0xff]
        %v359 = vld [vmem:[%s299] sm:$0xff]
        %v360 = vld [vmem:[%s299 + $0x8] sm:$0xff]
        %v361 = vld [vmem:[%s299 + $0x10] sm:$0xff]
        %v362 = vld [vmem:[%s299 + $0x18] sm:$0xff]
        %v363 = vld [vmem:[%s299 + $0x20] sm:$0xff]
        %v364 = vld [vmem:[%s299 + $0x28] sm:$0xff]
        %v365 = vld [vmem:[%s299 + $0x30] sm:$0xff]
        %v366 = vld [vmem:[%s299 + $0x38] sm:$0xff]
        %v367 = vld [vmem:[%s299 + $0x40] sm:$0xff]
        %v368 = vld [vmem:[%s299 + $0x48] sm:$0xff]
        %v369 = vld [vmem:[%s299 + $0x50] sm:$0xff]
        %v370 = vld [vmem:[%s299 + $0x58] sm:$0xff]
        %v371 = vld [vmem:[%s299 + $0x60] sm:$0xff]
        %v372 = vld [vmem:[%s299 + $0x68] sm:$0xff]
        %v373 = vld [vmem:[%s299 + $0x70] sm:$0xff]
        %v374 = vld [vmem:[%s299 + $0x78] sm:$0xff]
        %375 = vmatprep.subr.mxu0 0.0
        %376 = vmatpush1.msra.mxu0 %v374
        %377 = vmatprep.subr.mxu0 0.0
        %378 = vmatpush1.msra.mxu0 %v373
        %379 = vmatprep.subr.mxu0 0.0
        %380 = vmatpush1.msra.mxu0 %v372
        %381 = vmatprep.subr.mxu0 0.0
        %382 = vmatpush1.msra.mxu0 %v371
        %383 = vmatprep.subr.mxu0 0.0
        %384 = vmatpush1.msra.mxu0 %v370
        %385 = vmatprep.subr.mxu0 0.0
        %386 = vmatpush1.msra.mxu0 %v369
        %387 = vmatprep.subr.mxu0 0.0
        %388 = vmatpush1.msra.mxu0 %v368
        %389 = vmatprep.subr.mxu0 0.0
        %390 = vmatpush1.msra.mxu0 %v367
        %391 = vmatprep.subr.mxu0 0.0
        %392 = vmatpush1.msra.mxu0 %v366
        %393 = vmatprep.subr.mxu0 0.0
        %394 = vmatpush1.msra.mxu0 %v365
        %395 = vmatprep.subr.mxu0 0.0
        %396 = vmatpush1.msra.mxu0 %v364
        %397 = vmatprep.subr.mxu0 0.0
        %398 = vmatpush1.msra.mxu0 %v363
        %399 = vmatprep.subr.mxu0 0.0
        %400 = vmatpush1.msra.mxu0 %v362
        %401 = vmatprep.subr.mxu0 0.0
        %402 = vmatpush1.msra.mxu0 %v361
        %403 = vmatprep.subr.mxu0 0.0
        %404 = vmatpush1.msra.mxu0 %v360
        %405 = vmatprep.subr.mxu0 0.0
        %406 = vmatpush1.msra.mxu0 %v359
        %407 = vmatprep.subr.mxu0 0.0
        %408 = vmatpush2.msra.mxu0 0.0
        %409 = vmatprep.subr.mxu0 0.0
        %410 = vmatpush2.msra.mxu0 0.0
        %411 = vmatprep.subr.mxu0 0.0
        %412 = vmatpush2.msra.mxu0 0.0
        %413 = vmatprep.subr.mxu0 0.0
        %414 = vmatpush2.msra.mxu0 0.0
        %415 = vmatprep.subr.mxu0 0.0
        %416 = vmatpush2.msra.mxu0 0.0
        %417 = vmatprep.subr.mxu0 0.0
        %418 = vmatpush2.msra.mxu0 0.0
        %419 = vmatprep.subr.mxu0 0.0
        %420 = vmatpush2.msra.mxu0 0.0
        %421 = vmatprep.subr.mxu0 0.0
        %422 = vmatpush2.msra.mxu0 0.0
        %423 = vmatprep.subr.mxu0 0.0
        %424 = vmatpush2.msra.mxu0 0.0
        %425 = vmatprep.subr.mxu0 0.0
        %426 = vmatpush2.msra.mxu0 0.0
        %427 = vmatprep.subr.mxu0 0.0
        %428 = vmatpush2.msra.mxu0 0.0
        %429 = vmatprep.subr.mxu0 0.0
        %430 = vmatpush2.msra.mxu0 0.0
        %431 = vmatprep.subr.mxu0 0.0
        %432 = vmatpush2.msra.mxu0 0.0
        %433 = vmatprep.subr.mxu0 0.0
        %434 = vmatpush2.msra.mxu0 0.0
        %435 = vmatprep.subr.mxu0 0.0
        %436 = vmatpush2.msra.mxu0 0.0
        %437 = vmatprep.subr.mxu0 0.0
        %438 = vmatpush2.msra.mxu0 0.0
        %439 = vmatprep.mubr.f32.mxu0 0.0
        %440 = vmatmul.mubr.f32.gmra.mxu0 %v343
        %v441 = vpop.f32.mrf.mxu0
        %v442 = vadd.f32 0.0, %v441
        %v443 = vpop.f32.mrf.mxu0
        %444 = vmatprep.mubr.f32.mxu0 0.0
        %445 = vmatmul.mubr.f32.gmra.mxu0 %v344
        %v446 = vpop.f32.mrf.mxu0
        %v447 = vadd.f32 0.0, %v446
        %v448 = vpop.f32.mrf.mxu0
        %449 = vmatprep.mubr.f32.mxu0 0.0
        %450 = vmatmul.mubr.f32.gmra.mxu0 %v345
        %v451 = vpop.f32.mrf.mxu0
        %v452 = vadd.f32 0.0, %v451
        %v453 = vpop.f32.mrf.mxu0
        %454 = vmatprep.mubr.f32.mxu0 0.0
        %455 = vmatmul.mubr.f32.gmra.mxu0 %v346
        %v456 = vpop.f32.mrf.mxu0
        %v457 = vadd.f32 0.0, %v456
        %v458 = vpop.f32.mrf.mxu0
        %459 = vmatprep.mubr.f32.mxu0 0.0
        %460 = vmatmul.mubr.f32.gmra.mxu0 %v347
        %v461 = vpop.f32.mrf.mxu0
        %v462 = vadd.f32 0.0, %v461
        %v463 = vpop.f32.mrf.mxu0
        %464 = vmatprep.mubr.f32.mxu0 0.0
        %465 = vmatmul.mubr.f32.gmra.mxu0 %v348
        %v466 = vpop.f32.mrf.mxu0
        %v467 = vadd.f32 0.0, %v466
        %v468 = vpop.f32.mrf.mxu0
        %469 = vmatprep.mubr.f32.mxu0 0.0
        %470 = vmatmul.mubr.f32.gmra.mxu0 %v349
        %v471 = vpop.f32.mrf.mxu0
        %v472 = vadd.f32 0.0, %v471
        %v473 = vpop.f32.mrf.mxu0
        %474 = vmatprep.mubr.f32.mxu0 0.0
        %475 = vmatmul.mubr.f32.gmra.mxu0 %v350
        %v476 = vpop.f32.mrf.mxu0
        %v477 = vadd.f32 0.0, %v476
        %v478 = vpop.f32.mrf.mxu0
        %479 = vmatprep.mubr.f32.mxu0 0.0
        %480 = vmatmul.mubr.f32.gmra.mxu0 %v351
        %v481 = vpop.f32.mrf.mxu0
        %v482 = vadd.f32 0.0, %v481
        %v483 = vpop.f32.mrf.mxu0
        %484 = vmatprep.mubr.f32.mxu0 0.0
        %485 = vmatmul.mubr.f32.gmra.mxu0 %v352
        %v486 = vpop.f32.mrf.mxu0
        %v487 = vadd.f32 0.0, %v486
        %v488 = vpop.f32.mrf.mxu0
        %489 = vmatprep.mubr.f32.mxu0 0.0
        %490 = vmatmul.mubr.f32.gmra.mxu0 %v353
        %v491 = vpop.f32.mrf.mxu0
        %v492 = vadd.f32 0.0, %v491
        %v493 = vpop.f32.mrf.mxu0
        %494 = vmatprep.mubr.f32.mxu0 0.0
        %495 = vmatmul.mubr.f32.gmra.mxu0 %v354
        %v496 = vpop.f32.mrf.mxu0
        %v497 = vadd.f32 0.0, %v496
        %v498 = vpop.f32.mrf.mxu0
        %499 = vmatprep.mubr.f32.mxu0 0.0
        %500 = vmatmul.mubr.f32.gmra.mxu0 %v355
        %v501 = vpop.f32.mrf.mxu0
        %v502 = vadd.f32 0.0, %v501
        %v503 = vpop.f32.mrf.mxu0
        %504 = vmatprep.mubr.f32.mxu0 0.0
        %505 = vmatmul.mubr.f32.gmra.mxu0 %v356
        %v506 = vpop.f32.mrf.mxu0
        %v507 = vadd.f32 0.0, %v506
        %v508 = vpop.f32.mrf.mxu0
        %509 = vmatprep.mubr.f32.mxu0 0.0
        %510 = vmatmul.mubr.f32.gmra.mxu0 %v357
        %v511 = vpop.f32.mrf.mxu0
        %v512 = vadd.f32 0.0, %v511
        %v513 = vpop.f32.mrf.mxu0
        %514 = vmatprep.mubr.f32.mxu0 0.0
        %515 = vmatmul.mubr.f32.gmra.mxu0 %v358
        %v516 = vpop.f32.mrf.mxu0
        %v517 = vadd.f32 0.0, %v516
        %v518 = vpop.f32.mrf.mxu0
        %519 = vdwg.mxu0
        %v520 = vadd.f32 %v327, %v442
        %v521 = vadd.f32 %v328, %v447
        %v522 = vadd.f32 %v329, %v452
        %v523 = vadd.f32 %v330, %v457
        %v524 = vadd.f32 %v331, %v462
        %v525 = vadd.f32 %v332, %v467
        %v526 = vadd.f32 %v333, %v472
        %v527 = vadd.f32 %v334, %v477
        %v528 = vadd.f32 %v335, %v482
        %v529 = vadd.f32 %v336, %v487
        %v530 = vadd.f32 %v337, %v492
        %v531 = vadd.f32 %v338, %v497
        %v532 = vadd.f32 %v339, %v502
        %v533 = vadd.f32 %v340, %v507
        %v534 = vadd.f32 %v341, %v512
        %v535 = vadd.f32 %v342, %v517
        %536 = vst [vmem:[#allocation2] sm:$0xff] %v520
        %537 = vst [vmem:[#allocation2 + $0x8] sm:$0xff] %v521
        %538 = vst [vmem:[#allocation2 + $0x10] sm:$0xff] %v522
        %539 = vst [vmem:[#allocation2 + $0x18] sm:$0xff] %v523
        %540 = vst [vmem:[#allocation2 + $0x20] sm:$0xff] %v524
        %541 = vst [vmem:[#allocation2 + $0x28] sm:$0xff] %v525
        %542 = vst [vmem:[#allocation2 + $0x30] sm:$0xff] %v526
        %543 = vst [vmem:[#allocation2 + $0x38] sm:$0xff] %v527
        %544 = vst [vmem:[#allocation2 + $0x40] sm:$0xff] %v528
        %545 = vst [vmem:[#allocation2 + $0x48] sm:$0xff] %v529
        %546 = vst [vmem:[#allocation2 + $0x50] sm:$0xff] %v530
        %547 = vst [vmem:[#allocation2 + $0x58] sm:$0xff] %v531
        %548 = vst [vmem:[#allocation2 + $0x60] sm:$0xff] %v532
        %549 = vst [vmem:[#allocation2 + $0x68] sm:$0xff] %v533
        %550 = vst [vmem:[#allocation2 + $0x70] sm:$0xff] %v534
        %551 = vst [vmem:[#allocation2 + $0x78] sm:$0xff] %v535
        %p552 = scmp.eq.s32.totalorder %s19, 2
        // Predicated region
        $region75: #{dhgcn_forward.11} parent=65 // pred_check
          %p553 = pneg %p552
        $region76: #{dhgcn_forward.11} parent=65 // pred_check_branch
          %555 = sbr.rel (%p553) target = $region78
        $region77: #{dhgcn_forward.11} parent=65 // pred_region
          %v556 = vld [vmem:[#allocation2] sm:$0xff]
          %v557 = vld [vmem:[#allocation2 + $0x8] sm:$0xff]
          %v558 = vld [vmem:[#allocation2 + $0x10] sm:$0xff]
          %v559 = vld [vmem:[#allocation2 + $0x18] sm:$0xff]
          %v560 = vld [vmem:[#allocation2 + $0x20] sm:$0xff]
          %v561 = vld [vmem:[#allocation2 + $0x28] sm:$0xff]
          %v562 = vld [vmem:[#allocation2 + $0x30] sm:$0xff]
          %v563 = vld [vmem:[#allocation2 + $0x38] sm:$0xff]
          %v564 = vld [vmem:[#allocation2 + $0x40] sm:$0xff]
          %v565 = vld [vmem:[#allocation2 + $0x48] sm:$0xff]
          %v566 = vld [vmem:[#allocation2 + $0x50] sm:$0xff]
          %v567 = vld [vmem:[#allocation2 + $0x58] sm:$0xff]
          %v568 = vld [vmem:[#allocation2 + $0x60] sm:$0xff]
          %v569 = vld [vmem:[#allocation2 + $0x68] sm:$0xff]
          %v570 = vld [vmem:[#allocation2 + $0x70] sm:$0xff]
          %v571 = vld [vmem:[#allocation2 + $0x78] sm:$0xff]
          %v572 = vld [vmem:[%s2] sm:$0x1]
          %v574 = vlaneseq
          %v575 = vshrl.u32 %v574, 7
          %v576 = vsub.s32 0, %v575
          %v577 = vrot.slane %v572, %v576
          %v579 = vadd.f32 %v556, %v577
          %v580 = vadd.f32 %v557, %v577
          %v581 = vadd.f32 %v558, %v577
          %v582 = vadd.f32 %v559, %v577
          %v583 = vadd.f32 %v560, %v577
          %v584 = vadd.f32 %v561, %v577
          %v585 = vadd.f32 %v562, %v577
          %v586 = vadd.f32 %v563, %v577
          %v587 = vadd.f32 %v564, %v577
          %v588 = vadd.f32 %v565, %v577
          %v589 = vadd.f32 %v566, %v577
          %v590 = vadd.f32 %v567, %v577
          %v591 = vadd.f32 %v568, %v577
          %v592 = vadd.f32 %v569, %v577
          %v593 = vadd.f32 %v570, %v577
          %v594 = vadd.f32 %v571, %v577
          %595 = vst [vmem:[%s305] sm:$0xff] %v579
          %596 = vst [vmem:[%s305 + $0x8] sm:$0xff] %v580
          %597 = vst [vmem:[%s305 + $0x10] sm:$0xff] %v581
          %598 = vst [vmem:[%s305 + $0x18] sm:$0xff] %v582
          %599 = vst [vmem:[%s305 + $0x20] sm:$0xff] %v583
          %600 = vst [vmem:[%s305 + $0x28] sm:$0xff] %v584
          %601 = vst [vmem:[%s305 + $0x30] sm:$0xff] %v585
          %602 = vst [vmem:[%s305 + $0x38] sm:$0xff] %v586
          %603 = vst [vmem:[%s305 + $0x40] sm:$0xff] %v587
          %604 = vst [vmem:[%s305 + $0x48] sm:$0xff] %v588
          %605 = vst [vmem:[%s305 + $0x50] sm:$0xff] %v589
          %606 = vst [vmem:[%s305 + $0x58] sm:$0xff] %v590
          %607 = vst [vmem:[%s305 + $0x60] sm:$0xff] %v591
          %608 = vst [vmem:[%s305 + $0x68] sm:$0xff] %v592
          %609 = vst [vmem:[%s305 + $0x70] sm:$0xff] %v593
          %610 = vst [vmem:[%s305 + $0x78] sm:$0xff] %v594
        $region78: #{dhgcn_forward.11} parent=65 // pred_fallthru
          _
        %s611 = smul.u32 16, %s18
        %p612 = scmp.lt.s32.totalorder %s611, 47
        %s613 = scalar_select %p612, %s611, 47
        %s614 = smul.addr %s613, 8
        %s615 = scalar_lea.vmem %s3, %s614
        // Predicated region
        $region79: #{dhgcn_forward.11} parent=65 // pred_check
          %p616 = pneg %p119
        $region80: #{dhgcn_forward.11} parent=65 // pred_check_branch
          %618 = sbr.rel (%p616) target = $region82
        $region81: #{dhgcn_forward.11} parent=65 // pred_region
          %s619 = smul.u32 16, %s18
        $region82: #{dhgcn_forward.11} parent=65 // pred_fallthru
          _
      $region66: #{dhgcn_forward.11} parent=5 // pred_fallthru
        _
      %p620 = scmp.le.s32.totalorder 2, %s9
      // Predicated region
      $region83: #{dhgcn_forward.11} parent=5 // pred_check
        %p621 = pneg %p620
      $region84: #{dhgcn_forward.11} parent=5 // pred_check_branch
        %623 = sbr.rel (%p621) target = $region86
      $region85: #{dhgcn_forward.11} parent=5 // pred_region
        %s624 = ssub.s32 %s9, 2
        // Predicated region
        $region87: #{dhgcn_forward.11} parent=85 // pred_check
          %p625 = pneg %p125
        $region88: #{dhgcn_forward.11} parent=85 // pred_check_branch
          %627 = sbr.rel (%p625) target = $region90
        $region89: #{dhgcn_forward.11} parent=85 // pred_region
          %s628 = smul.u32 16, %s20
          %p629 = scmp.lt.s32.totalorder %s628, 47
          %s630 = scalar_select %p629, %s628, 47
          %s631 = smul.addr %s630, 8
          %s632 = scalar_lea.vmem %s3, %s631
        $region90: #{dhgcn_forward.11} parent=85 // pred_fallthru
          _
      $region86: #{dhgcn_forward.11} parent=5 // pred_fallthru
        _
    $region6: #{dhgcn_forward.11} parent=1 // loop_footer
      %s13 = sadd.s32 1, %s9
    $region7: #{dhgcn_forward.11} parent=1 // loop_footer_branch
      %8 = sbr.rel target = $region3
    $region8: #{dhgcn_forward.11} parent=1 // loop_exit
      _

// kernel: dhgcn_forward.6
$region0: #{dhgcn_forward.6}
  #allocation0 [shape = 'u32[]', space=smem, size = 0x4, offset = 0x4, fixed_abs, tag = 'smem constant byte address 0x4 - core index']
  #allocation1 [shape = 'u32[144,128]{1,0:T(1,128)}', space=vmem, size = 0x12000, scoped, tag = 'internal scratch']
  %s0 = inlined_call_operand.vmem [shape: f32[384,128], index: 0, kind: input, shape index: {}]
  %s1 = inlined_call_operand.vmem [shape: f32[128,128], index: 1, kind: input, shape index: {}]
  %s2 = inlined_call_operand.vmem [shape: f32[384,128], index: 2, kind: output, shape index: {}]
  %s3 = sld [smem:[#allocation0]]
  $region41: #{dhgcn_forward.6} parent=0
    _
  %s5 = ssub.s32 1, %s3
  %s6 = scalar_select 0, %s5, %s3
  loop: start=0, step=1, limit=5
  $region2: #{dhgcn_forward.6} parent=0 // loop_pre_header
    _
  $region3: #{dhgcn_forward.6} parent=0 // loop_header
    %s8 = sphi 0, %s12
    %p9 = scmp.ge.s32.totalorder %s8, 5
    %s18 = sphi 0, %s20
    %s21 = sphi 0, %s18
    %s22 = sphi 0, %s21
    %s38 = sphi 0, %s22
    %s42 = sphi 0, %s42
    %s44 = sphi 0, %s42
    %s45 = sphi 0, %s44
    %s59 = sphi 0, %s45
    %s65 = sphi 0, %s67
    %s68 = sphi 0, %s65
    %s69 = sphi 0, %s68
    %s85 = sphi 0, %s69
  $region4: #{dhgcn_forward.6} parent=0 // loop_header_branch
    %11 = sbr.rel (%p9) target = $region8
  $region5: #{dhgcn_forward.6} parent=0 // loop_body
    %s13 = ssub.s32 %s8, 1
    %s14 = ssub.s32 %s8, 2
    %s15 = sadd.s32 %s8, 1
    %s16 = ssub.s32 %s8, %s15
    %p17 = scmp.eq.s32.totalorder %s16, 0
    %s19 = sadd.s32 %s18, 1
    %s20 = scalar_select %p17, %s18, %s19
    %p23 = pneg %p17
    %p24 = scmp.eq.s32.totalorder %s8, 2
    %p25 = por %p23, %p24
    %p26 = scmp.ne.s32.totalorder %s18, %s21
    %p27 = scmp.eq.s32.totalorder %s8, 0
    %p28 = por %p26, %p27
    %p29 = scmp.ne.s32.totalorder %s18, %s21
    %p30 = scmp.eq.s32.totalorder %s13, 2
    %p31 = por %p29, %p30
    %p32 = scmp.ne.s32.totalorder %s21, %s22
    %p33 = scmp.eq.s32.totalorder %s13, 0
    %p34 = por %p32, %p33
    %p35 = scmp.ne.s32.totalorder %s21, %s22
    %p36 = scmp.eq.s32.totalorder %s14, 2
    %p37 = por %p35, %p36
    %p39 = scmp.ne.s32.totalorder %s22, %s38
    %p40 = scmp.eq.s32.totalorder %s14, 0
    %p41 = por %p39, %p40
    %s43 = sadd.s32 %s42, 1
    %p46 = scmp.eq.s32.totalorder %s8, 2
    %p47 = scmp.ne.s32.totalorder %s42, %s44
    %p48 = scmp.eq.s32.totalorder %s8, 0
    %p49 = por %p47, %p48
    %p50 = scmp.ne.s32.totalorder %s42, %s44
    %p51 = scmp.eq.s32.totalorder %s13, 2
    %p52 = por %p50, %p51
    %p53 = scmp.ne.s32.totalorder %s44, %s45
    %p54 = scmp.eq.s32.totalorder %s13, 0
    %p55 = por %p53, %p54
    %p56 = scmp.ne.s32.totalorder %s44, %s45
    %p57 = scmp.eq.s32.totalorder %s14, 2
    %p58 = por %p56, %p57
    %p60 = scmp.ne.s32.totalorder %s45, %s59
    %p61 = scmp.eq.s32.totalorder %s14, 0
    %p62 = por %p60, %p61
    %s63 = ssub.s32 %s8, %s15
    %p64 = scmp.eq.s32.totalorder %s63, 0
    %s66 = sadd.s32 %s65, 1
    %s67 = scalar_select %p64, %s65, %s66
    %p70 = pneg %p64
    %p71 = scmp.eq.s32.totalorder %s8, 2
    %p72 = por %p70, %p71
    %p73 = scmp.ne.s32.totalorder %s65, %s68
    %p74 = scmp.eq.s32.totalorder %s8, 0
    %p75 = por %p73, %p74
    %p76 = scmp.ne.s32.totalorder %s65, %s68
    %p77 = scmp.eq.s32.totalorder %s13, 2
    %p78 = por %p76, %p77
    %p79 = scmp.ne.s32.totalorder %s68, %s69
    %p80 = scmp.eq.s32.totalorder %s13, 0
    %p81 = por %p79, %p80
    %p82 = scmp.ne.s32.totalorder %s68, %s69
    %p83 = scmp.eq.s32.totalorder %s14, 2
    %p84 = por %p82, %p83
    %p86 = scmp.ne.s32.totalorder %s69, %s85
    %p87 = scmp.eq.s32.totalorder %s14, 0
    %p88 = por %p86, %p87
    %p89 = scmp.le.s32.totalorder 1, %s8
    %p90 = scmp.lt.s32.totalorder %s8, 4
    %p91 = pnand %p89, %p90
    %p92 = pneg %p91
    // Predicated region
    $region9: #{dhgcn_forward.6} parent=5 // pred_check
      _
    $region10: #{dhgcn_forward.6} parent=5 // pred_check_branch
      %94 = sbr.rel (%p91) target = $region12
    $region11: #{dhgcn_forward.6} parent=5 // pred_region
      %s95 = ssub.s32 %s8, 1
      // Predicated region
      $region13: #{dhgcn_forward.6} parent=11 // pred_check
        %p96 = pneg %p55
      $region14: #{dhgcn_forward.6} parent=11 // pred_check_branch
        %98 = sbr.rel (%p96) target = $region16
      $region15: #{dhgcn_forward.6} parent=11 // pred_region
        _
      $region16: #{dhgcn_forward.6} parent=11 // pred_fallthru
        _
    $region12: #{dhgcn_forward.6} parent=5 // pred_fallthru
      _
    %p99 = scmp.lt.s32.totalorder %s8, 3
    // Predicated region
    $region17: #{dhgcn_forward.6} parent=5 // pred_check
      %p100 = pneg %p99
    $region18: #{dhgcn_forward.6} parent=5 // pred_check_branch
      %102 = sbr.rel (%p100) target = $region20
    $region19: #{dhgcn_forward.6} parent=5 // pred_region
      // Predicated region
      $region21: #{dhgcn_forward.6} parent=19 // pred_check
        %p103 = pneg %p28
      $region22: #{dhgcn_forward.6} parent=19 // pred_check_branch
        %105 = sbr.rel (%p103) target = $region24
      $region23: #{dhgcn_forward.6} parent=19 // pred_region
        %s106 = smul.u32 16, %s8
        %p107 = scmp.lt.s32.totalorder %s106, 47
        %s108 = scalar_select %p107, %s106, 47
        %s109 = smul.addr %s108, 8
        %s110 = scalar_lea.vmem %s0, %s109
        %s111 = smul.u32 16, %s8
      $region24: #{dhgcn_forward.6} parent=19 // pred_fallthru
        _
    $region20: #{dhgcn_forward.6} parent=5 // pred_fallthru
      _
    %p112 = scmp.le.s32.totalorder 1, %s8
    %p113 = scmp.lt.s32.totalorder %s8, 4
    %p114 = pnand %p112, %p113
    %p115 = pneg %p114
    // Predicated region
    $region25: #{dhgcn_forward.6} parent=5 // pred_check
      _
    $region26: #{dhgcn_forward.6} parent=5 // pred_check_branch
      %117 = sbr.rel (%p114) target = $region28
    $region27: #{dhgcn_forward.6} parent=5 // pred_region
      %s118 = ssub.s32 %s8, 1
      %s119 = smul.u32 16, %s13
      %p120 = scmp.lt.s32.totalorder %s119, 47
      %s121 = scalar_select %p120, %s119, 47
      %s122 = smul.addr %s121, 8
      %s123 = scalar_lea.vmem %s0, %s122
      %p124 = pneg %p34
      %p125 = pneg %p31
      %p126 = pneg %p55
      %p127 = pneg %p52
      %p128 = pneg %p81
      %p129 = pneg %p78
      %s130 = smul.u32 16, %s13
      %p131 = scmp.lt.s32.totalorder %s130, 47
      %s132 = scalar_select %p131, %s130, 47
      %s133 = smul.addr %s132, 8
      %s134 = scalar_lea.vmem %s2, %s133
      %s135 = smul.u32 16, %s13
      %p136 = scmp.lt.s32.totalorder %s135, 47
      %s137 = scalar_select %p136, %s135, 47
      %s138 = smul.addr %s137, 8
      %s139 = scalar_lea.vmem %s0, %s138
      %s140 = smul.u32 16, %s13
      %s141 = smul.u32 16, %s13
      %p142 = scmp.lt.s32.totalorder %s141, 47
      %s143 = scalar_select %p142, %s141, 47
      %s144 = smul.addr %s143, 8
      %s145 = scalar_lea.vmem %s2, %s144
      %s146 = smul.u32 16, %s13
      %v147 = vld [vmem:[%s139] sm:$0xff]
      %v148 = vld [vmem:[%s139 + $0x8] sm:$0xff]
      %v149 = vld [vmem:[%s139 + $0x10] sm:$0xff]
      %v150 = vld [vmem:[%s139 + $0x18] sm:$0xff]
      %v151 = vld [vmem:[%s139 + $0x20] sm:$0xff]
      %v152 = vld [vmem:[%s139 + $0x28] sm:$0xff]
      %v153 = vld [vmem:[%s139 + $0x30] sm:$0xff]
      %v154 = vld [vmem:[%s139 + $0x38] sm:$0xff]
      %v155 = vld [vmem:[%s139 + $0x40] sm:$0xff]
      %v156 = vld [vmem:[%s139 + $0x48] sm:$0xff]
      %v157 = vld [vmem:[%s139 + $0x50] sm:$0xff]
      %v158 = vld [vmem:[%s139 + $0x58] sm:$0xff]
      %v159 = vld [vmem:[%s139 + $0x60] sm:$0xff]
      %v160 = vld [vmem:[%s139 + $0x68] sm:$0xff]
      %v161 = vld [vmem:[%s139 + $0x70] sm:$0xff]
      %v162 = vld [vmem:[%s139 + $0x78] sm:$0xff]
      %v163 = vld [vmem:[%s1] sm:$0xff]
      %v164 = vld [vmem:[%s1 + $0x8] sm:$0xff]
      %v165 = vld [vmem:[%s1 + $0x10] sm:$0xff]
      %v166 = vld [vmem:[%s1 + $0x18] sm:$0xff]
      %v167 = vld [vmem:[%s1 + $0x20] sm:$0xff]
      %v168 = vld [vmem:[%s1 + $0x28] sm:$0xff]
      %v169 = vld [vmem:[%s1 + $0x30] sm:$0xff]
      %v170 = vld [vmem:[%s1 + $0x38] sm:$0xff]
      %v171 = vld [vmem:[%s1 + $0x40] sm:$0xff]
      %v172 = vld [vmem:[%s1 + $0x48] sm:$0xff]
      %v173 = vld [vmem:[%s1 + $0x50] sm:$0xff]
      %v174 = vld [vmem:[%s1 + $0x58] sm:$0xff]
      %v175 = vld [vmem:[%s1 + $0x60] sm:$0xff]
      %v176 = vld [vmem:[%s1 + $0x68] sm:$0xff]
      %v177 = vld [vmem:[%s1 + $0x70] sm:$0xff]
      %v178 = vld [vmem:[%s1 + $0x78] sm:$0xff]
      %179 = vmatprep.subr.mxu0 0.0
      %180 = vmatpush1.msra.mxu0 %v178
      %181 = vmatprep.subr.mxu0 0.0
      %182 = vmatpush1.msra.mxu0 %v177
      %183 = vmatprep.subr.mxu0 0.0
      %184 = vmatpush1.msra.mxu0 %v176
      %185 = vmatprep.subr.mxu0 0.0
      %186 = vmatpush1.msra.mxu0 %v175
      %187 = vmatprep.subr.mxu0 0.0
      %188 = vmatpush1.msra.mxu0 %v174
      %189 = vmatprep.subr.mxu0 0.0
      %190 = vmatpush1.msra.mxu0 %v173
      %191 = vmatprep.subr.mxu0 0.0
      %192 = vmatpush1.msra.mxu0 %v172
      %193 = vmatprep.subr.mxu0 0.0
      %194 = vmatpush1.msra.mxu0 %v171
      %195 = vmatprep.subr.mxu0 0.0
      %196 = vmatpush1.msra.mxu0 %v170
      %197 = vmatprep.subr.mxu0 0.0
      %198 = vmatpush1.msra.mxu0 %v169
      %199 = vmatprep.subr.mxu0 0.0
      %200 = vmatpush1.msra.mxu0 %v168
      %201 = vmatprep.subr.mxu0 0.0
      %202 = vmatpush1.msra.mxu0 %v167
      %203 = vmatprep.subr.mxu0 0.0
      %204 = vmatpush1.msra.mxu0 %v166
      %205 = vmatprep.subr.mxu0 0.0
      %206 = vmatpush1.msra.mxu0 %v165
      %207 = vmatprep.subr.mxu0 0.0
      %208 = vmatpush1.msra.mxu0 %v164
      %209 = vmatprep.subr.mxu0 0.0
      %210 = vmatpush1.msra.mxu0 %v163
      %211 = vmatprep.subr.mxu0 0.0
      %212 = vmatpush2.msra.mxu0 0.0
      %213 = vmatprep.subr.mxu0 0.0
      %214 = vmatpush2.msra.mxu0 0.0
      %215 = vmatprep.subr.mxu0 0.0
      %216 = vmatpush2.msra.mxu0 0.0
      %217 = vmatprep.subr.mxu0 0.0
      %218 = vmatpush2.msra.mxu0 0.0
      %219 = vmatprep.subr.mxu0 0.0
      %220 = vmatpush2.msra.mxu0 0.0
      %221 = vmatprep.subr.mxu0 0.0
      %222 = vmatpush2.msra.mxu0 0.0
      %223 = vmatprep.subr.mxu0 0.0
      %224 = vmatpush2.msra.mxu0 0.0
      %225 = vmatprep.subr.mxu0 0.0
      %226 = vmatpush2.msra.mxu0 0.0
      %227 = vmatprep.subr.mxu0 0.0
      %228 = vmatpush2.msra.mxu0 0.0
      %229 = vmatprep.subr.mxu0 0.0
      %230 = vmatpush2.msra.mxu0 0.0
      %231 = vmatprep.subr.mxu0 0.0
      %232 = vmatpush2.msra.mxu0 0.0
      %233 = vmatprep.subr.mxu0 0.0
      %234 = vmatpush2.msra.mxu0 0.0
      %235 = vmatprep.subr.mxu0 0.0
      %236 = vmatpush2.msra.mxu0 0.0
      %237 = vmatprep.subr.mxu0 0.0
      %238 = vmatpush2.msra.mxu0 0.0
      %239 = vmatprep.subr.mxu0 0.0
      %240 = vmatpush2.msra.mxu0 0.0
      %241 = vmatprep.subr.mxu0 0.0
      %242 = vmatpush2.msra.mxu0 0.0
      %243 = vmatprep.mubr.f32.mxu0 0.0
      %244 = vmatmul.mubr.f32.gmra.mxu0 %v147
      %v245 = vpop.f32.mrf.mxu0
      %v246 = vadd.f32 0.0, %v245
      %v247 = vpop.f32.mrf.mxu0
      %248 = vmatprep.mubr.f32.mxu0 0.0
      %249 = vmatmul.mubr.f32.gmra.mxu0 %v148
      %v250 = vpop.f32.mrf.mxu0
      %v251 = vadd.f32 0.0, %v250
      %v252 = vpop.f32.mrf.mxu0
      %253 = vmatprep.mubr.f32.mxu0 0.0
      %254 = vmatmul.mubr.f32.gmra.mxu0 %v149
      %v255 = vpop.f32.mrf.mxu0
      %v256 = vadd.f32 0.0, %v255
      %v257 = vpop.f32.mrf.mxu0
      %258 = vmatprep.mubr.f32.mxu0 0.0
      %259 = vmatmul.mubr.f32.gmra.mxu0 %v150
      %v260 = vpop.f32.mrf.mxu0
      %v261 = vadd.f32 0.0, %v260
      %v262 = vpop.f32.mrf.mxu0
      %263 = vmatprep.mubr.f32.mxu0 0.0
      %264 = vmatmul.mubr.f32.gmra.mxu0 %v151
      %v265 = vpop.f32.mrf.mxu0
      %v266 = vadd.f32 0.0, %v265
      %v267 = vpop.f32.mrf.mxu0
      %268 = vmatprep.mubr.f32.mxu0 0.0
      %269 = vmatmul.mubr.f32.gmra.mxu0 %v152
      %v270 = vpop.f32.mrf.mxu0
      %v271 = vadd.f32 0.0, %v270
      %v272 = vpop.f32.mrf.mxu0
      %273 = vmatprep.mubr.f32.mxu0 0.0
      %274 = vmatmul.mubr.f32.gmra.mxu0 %v153
      %v275 = vpop.f32.mrf.mxu0
      %v276 = vadd.f32 0.0, %v275
      %v277 = vpop.f32.mrf.mxu0
      %278 = vmatprep.mubr.f32.mxu0 0.0
      %279 = vmatmul.mubr.f32.gmra.mxu0 %v154
      %v280 = vpop.f32.mrf.mxu0
      %v281 = vadd.f32 0.0, %v280
      %v282 = vpop.f32.mrf.mxu0
      %283 = vmatprep.mubr.f32.mxu0 0.0
      %284 = vmatmul.mubr.f32.gmra.mxu0 %v155
      %v285 = vpop.f32.mrf.mxu0
      %v286 = vadd.f32 0.0, %v285
      %v287 = vpop.f32.mrf.mxu0
      %288 = vmatprep.mubr.f32.mxu0 0.0
      %289 = vmatmul.mubr.f32.gmra.mxu0 %v156
      %v290 = vpop.f32.mrf.mxu0
      %v291 = vadd.f32 0.0, %v290
      %v292 = vpop.f32.mrf.mxu0
      %293 = vmatprep.mubr.f32.mxu0 0.0
      %294 = vmatmul.mubr.f32.gmra.mxu0 %v157
      %v295 = vpop.f32.mrf.mxu0
      %v296 = vadd.f32 0.0, %v295
      %v297 = vpop.f32.mrf.mxu0
      %298 = vmatprep.mubr.f32.mxu0 0.0
      %299 = vmatmul.mubr.f32.gmra.mxu0 %v158
      %v300 = vpop.f32.mrf.mxu0
      %v301 = vadd.f32 0.0, %v300
      %v302 = vpop.f32.mrf.mxu0
      %303 = vmatprep.mubr.f32.mxu0 0.0
      %304 = vmatmul.mubr.f32.gmra.mxu0 %v159
      %v305 = vpop.f32.mrf.mxu0
      %v306 = vadd.f32 0.0, %v305
      %v307 = vpop.f32.mrf.mxu0
      %308 = vmatprep.mubr.f32.mxu0 0.0
      %309 = vmatmul.mubr.f32.gmra.mxu0 %v160
      %v310 = vpop.f32.mrf.mxu0
      %v311 = vadd.f32 0.0, %v310
      %v312 = vpop.f32.mrf.mxu0
      %313 = vmatprep.mubr.f32.mxu0 0.0
      %314 = vmatmul.mubr.f32.gmra.mxu0 %v161
      %v315 = vpop.f32.mrf.mxu0
      %v316 = vadd.f32 0.0, %v315
      %v317 = vpop.f32.mrf.mxu0
      %318 = vmatprep.mubr.f32.mxu0 0.0
      %319 = vmatmul.mubr.f32.gmra.mxu0 %v162
      %v320 = vpop.f32.mrf.mxu0
      %v321 = vadd.f32 0.0, %v320
      %v322 = vpop.f32.mrf.mxu0
      %323 = vdwg.mxu0
      %324 = vst [vmem:[%s145] sm:$0xff] %v246
      %325 = vst [vmem:[%s145 + $0x8] sm:$0xff] %v251
      %326 = vst [vmem:[%s145 + $0x10] sm:$0xff] %v256
      %327 = vst [vmem:[%s145 + $0x18] sm:$0xff] %v261
      %328 = vst [vmem:[%s145 + $0x20] sm:$0xff] %v266
      %329 = vst [vmem:[%s145 + $0x28] sm:$0xff] %v271
      %330 = vst [vmem:[%s145 + $0x30] sm:$0xff] %v276
      %331 = vst [vmem:[%s145 + $0x38] sm:$0xff] %v281
      %332 = vst [vmem:[%s145 + $0x40] sm:$0xff] %v286
      %333 = vst [vmem:[%s145 + $0x48] sm:$0xff] %v291
      %334 = vst [vmem:[%s145 + $0x50] sm:$0xff] %v296
      %335 = vst [vmem:[%s145 + $0x58] sm:$0xff] %v301
      %336 = vst [vmem:[%s145 + $0x60] sm:$0xff] %v306
      %337 = vst [vmem:[%s145 + $0x68] sm:$0xff] %v311
      %338 = vst [vmem:[%s145 + $0x70] sm:$0xff] %v316
      %339 = vst [vmem:[%s145 + $0x78] sm:$0xff] %v321
      %s340 = smul.u32 16, %s13
      %p341 = scmp.lt.s32.totalorder %s340, 47
      %s342 = scalar_select %p341, %s340, 47
      %s343 = smul.addr %s342, 8
      %s344 = scalar_lea.vmem %s2, %s343
      // Predicated region
      $region29: #{dhgcn_forward.6} parent=27 // pred_check
        %p345 = pneg %p78
      $region30: #{dhgcn_forward.6} parent=27 // pred_check_branch
        %347 = sbr.rel (%p345) target = $region32
      $region31: #{dhgcn_forward.6} parent=27 // pred_region
        %s348 = smul.u32 16, %s13
      $region32: #{dhgcn_forward.6} parent=27 // pred_fallthru
        _
    $region28: #{dhgcn_forward.6} parent=5 // pred_fallthru
      _
    %p349 = scmp.le.s32.totalorder 2, %s8
    // Predicated region
    $region33: #{dhgcn_forward.6} parent=5 // pred_check
      %p350 = pneg %p349
    $region34: #{dhgcn_forward.6} parent=5 // pred_check_branch
      %352 = sbr.rel (%p350) target = $region36
    $region35: #{dhgcn_forward.6} parent=5 // pred_region
      %s353 = ssub.s32 %s8, 2
      // Predicated region
      $region37: #{dhgcn_forward.6} parent=35 // pred_check
        %p354 = pneg %p84
      $region38: #{dhgcn_forward.6} parent=35 // pred_check_branch
        %356 = sbr.rel (%p354) target = $region40
      $region39: #{dhgcn_forward.6} parent=35 // pred_region
        %s357 = smul.u32 16, %s14
        %p358 = scmp.lt.s32.totalorder %s357, 47
        %s359 = scalar_select %p358, %s357, 47
        %s360 = smul.addr %s359, 8
        %s361 = scalar_lea.vmem %s2, %s360
      $region40: #{dhgcn_forward.6} parent=35 // pred_fallthru
        _
    $region36: #{dhgcn_forward.6} parent=5 // pred_fallthru
      _
  $region6: #{dhgcn_forward.6} parent=0 // loop_footer
    %s12 = sadd.s32 1, %s8
  $region7: #{dhgcn_forward.6} parent=0 // loop_footer_branch
    %7 = sbr.rel target = $region3
  $region8: #{dhgcn_forward.6} parent=0 // loop_exit
    _

// kernel: dhgcn_forward.7
$region0: #{dhgcn_forward.7}
  #allocation0 [shape = 'u32[]', space=smem, size = 0x4, offset = 0x4, fixed_abs, tag = 'smem constant byte address 0x4 - core index']
  #allocation1 [shape = 'u32[144,128]{1,0:T(1,128)}', space=vmem, size = 0x12000, scoped, tag = 'internal scratch']
  #allocation2 [shape = 'f32[128,128]{1,0:T(8,128)}', space=vmem, size = 0x10000, scoped, tag = 'scratch operand']
  %s0 = inlined_call_operand.vmem [shape: f32[384,384], index: 0, kind: input, shape index: {}]
  %s1 = inlined_call_operand.vmem [shape: f32[384,128], index: 1, kind: input, shape index: {}]
  %s2 = inlined_call_operand.vmem [shape: f32[1,128], index: 2, kind: input, shape index: {}]
  %s3 = inlined_call_operand.vmem [shape: f32[384,128], index: 3, kind: output, shape index: {}]
  %s4 = sld [smem:[#allocation0]]
  $region91: #{dhgcn_forward.7} parent=0
    _
  %s6 = ssub.s32 1, %s4
  %s7 = scalar_select 0, %s6, %s4
  $region1: #{dhgcn_forward.7} parent=0
    #allocation3 [shape = 'u8[131072]{0}', space=vmem, size = 0x20000, scoped, tag = 'input window, operand 0']
    loop: start=0, step=1, limit=11
    $region2: #{dhgcn_forward.7} parent=1 // loop_pre_header
      _
    $region3: #{dhgcn_forward.7} parent=1 // loop_header
      %s9 = sphi 0, %s13
      %p10 = scmp.ge.s32.totalorder %s9, 11
      %s16 = sphi 0, %s28
      %s17 = sphi 0, %s24
      %s18 = sphi 0, %s16
      %s19 = sphi 0, %s17
      %s20 = sphi 0, %s18
      %s21 = sphi 0, %s19
      %s33 = sphi 0, %s35
      %s36 = sphi 0, %s33
      %s37 = sphi 0, %s36
      %s53 = sphi 0, %s37
      %s59 = sphi 0, %s61
      %s62 = sphi 0, %s59
      %s63 = sphi 0, %s62
      %s79 = sphi 0, %s63
      %s83 = sphi 0, %s83
      %s85 = sphi 0, %s83
      %s86 = sphi 0, %s85
      %s100 = sphi 0, %s86
      %s106 = sphi 0, %s108
      %s109 = sphi 0, %s106
      %s110 = sphi 0, %s109
      %s126 = sphi 0, %s110
    $region4: #{dhgcn_forward.7} parent=1 // loop_header_branch
      %12 = sbr.rel (%p10) target = $region8
    $region5: #{dhgcn_forward.7} parent=1 // loop_body
      %s14 = ssub.s32 %s9, 1
      %s15 = ssub.s32 %s9, 2
      %s22 = sadd.s32 1, %s17
      %p23 = scmp.ge.s32.totalorder %s22, 3
      %s24 = scalar_select %p23, 0, %s22
      %s25 = sadd.s32 1, %s16
      %s26 = scalar_select %p23, %s25, %s16
      %p27 = scmp.ge.s32.totalorder %s26, 3
      %s28 = scalar_select %p27, 0, %s26
      %s29 = ssub.s32 %s16, %s28
      %s30 = ssub.s32 %s17, %s24
      %s31 = sor.u32 %s29, %s30
      %p32 = scmp.eq.s32.totalorder %s31, 0
      %s34 = sadd.s32 %s33, 1
      %s35 = scalar_select %p32, %s33, %s34
      %p38 = pneg %p32
      %p39 = scmp.eq.s32.totalorder %s9, 8
      %p40 = por %p38, %p39
      %p41 = scmp.ne.s32.totalorder %s33, %s36
      %p42 = scmp.eq.s32.totalorder %s9, 0
      %p43 = por %p41, %p42
      %p44 = scmp.ne.s32.totalorder %s33, %s36
      %p45 = scmp.eq.s32.totalorder %s14, 8
      %p46 = por %p44, %p45
      %p47 = scmp.ne.s32.totalorder %s36, %s37
      %p48 = scmp.eq.s32.totalorder %s14, 0
      %p49 = por %p47, %p48
      %p50 = scmp.ne.s32.totalorder %s36, %s37
      %p51 = scmp.eq.s32.totalorder %s15, 8
      %p52 = por %p50, %p51
      %p54 = scmp.ne.s32.totalorder %s37, %s53
      %p55 = scmp.eq.s32.totalorder %s15, 0
      %p56 = por %p54, %p55
      %s57 = ssub.s32 %s17, %s24
      %p58 = scmp.eq.s32.totalorder %s57, 0
      %s60 = sadd.s32 %s59, 1
      %s61 = scalar_select %p58, %s59, %s60
      %p64 = pneg %p58
      %p65 = scmp.eq.s32.totalorder %s9, 8
      %p66 = por %p64, %p65
      %p67 = scmp.ne.s32.totalorder %s59, %s62
      %p68 = scmp.eq.s32.totalorder %s9, 0
      %p69 = por %p67, %p68
      %p70 = scmp.ne.s32.totalorder %s59, %s62
      %p71 = scmp.eq.s32.totalorder %s14, 8
      %p72 = por %p70, %p71
      %p73 = scmp.ne.s32.totalorder %s62, %s63
      %p74 = scmp.eq.s32.totalorder %s14, 0
      %p75 = por %p73, %p74
      %p76 = scmp.ne.s32.totalorder %s62, %s63
      %p77 = scmp.eq.s32.totalorder %s15, 8
      %p78 = por %p76, %p77
      %p80 = scmp.ne.s32.totalorder %s63, %s79
      %p81 = scmp.eq.s32.totalorder %s15, 0
      %p82 = por %p80, %p81
      %s84 = sadd.s32 %s83, 1
      %p87 = scmp.eq.s32.totalorder %s9, 8
      %p88 = scmp.ne.s32.totalorder %s83, %s85
      %p89 = scmp.eq.s32.totalorder %s9, 0
      %p90 = por %p88, %p89
      %p91 = scmp.ne.s32.totalorder %s83, %s85
      %p92 = scmp.eq.s32.totalorder %s14, 8
      %p93 = por %p91, %p92
      %p94 = scmp.ne.s32.totalorder %s85, %s86
      %p95 = scmp.eq.s32.totalorder %s14, 0
      %p96 = por %p94, %p95
      %p97 = scmp.ne.s32.totalorder %s85, %s86
      %p98 = scmp.eq.s32.totalorder %s15, 8
      %p99 = por %p97, %p98
      %p101 = scmp.ne.s32.totalorder %s86, %s100
      %p102 = scmp.eq.s32.totalorder %s15, 0
      %p103 = por %p101, %p102
      %s104 = ssub.s32 %s16, %s28
      %p105 = scmp.eq.s32.totalorder %s104, 0
      %s107 = sadd.s32 %s106, 1
      %s108 = scalar_select %p105, %s106, %s107
      %p111 = pneg %p105
      %p112 = scmp.eq.s32.totalorder %s9, 8
      %p113 = por %p111, %p112
      %p114 = scmp.ne.s32.totalorder %s106, %s109
      %p115 = scmp.eq.s32.totalorder %s9, 0
      %p116 = por %p114, %p115
      %p117 = scmp.ne.s32.totalorder %s106, %s109
      %p118 = scmp.eq.s32.totalorder %s14, 8
      %p119 = por %p117, %p118
      %p120 = scmp.ne.s32.totalorder %s109, %s110
      %p121 = scmp.eq.s32.totalorder %s14, 0
      %p122 = por %p120, %p121
      %p123 = scmp.ne.s32.totalorder %s109, %s110
      %p124 = scmp.eq.s32.totalorder %s15, 8
      %p125 = por %p123, %p124
      %p127 = scmp.ne.s32.totalorder %s110, %s126
      %p128 = scmp.eq.s32.totalorder %s15, 0
      %p129 = por %p127, %p128
      %p130 = scmp.le.s32.totalorder 1, %s9
      %p131 = scmp.lt.s32.totalorder %s9, 10
      %p132 = pnand %p130, %p131
      %p133 = pneg %p132
      // Predicated region
      $region9: #{dhgcn_forward.7} parent=5 // pred_check
        _
      $region10: #{dhgcn_forward.7} parent=5 // pred_check_branch
        %135 = sbr.rel (%p132) target = $region12
      $region11: #{dhgcn_forward.7} parent=5 // pred_region
        %s136 = ssub.s32 %s9, 1
        // Predicated region
        $region13: #{dhgcn_forward.7} parent=11 // pred_check
          %p137 = pneg %p96
        $region14: #{dhgcn_forward.7} parent=11 // pred_check_branch
          %139 = sbr.rel (%p137) target = $region16
        $region15: #{dhgcn_forward.7} parent=11 // pred_region
          _
        $region16: #{dhgcn_forward.7} parent=11 // pred_fallthru
          _
      $region12: #{dhgcn_forward.7} parent=5 // pred_fallthru
        _
      %p140 = scmp.lt.s32.totalorder %s9, 9
      // Predicated region
      $region17: #{dhgcn_forward.7} parent=5 // pred_check
        %p141 = pneg %p140
      $region18: #{dhgcn_forward.7} parent=5 // pred_check_branch
        %143 = sbr.rel (%p141) target = $region20
      $region19: #{dhgcn_forward.7} parent=5 // pred_region
        // Predicated region
        $region21: #{dhgcn_forward.7} parent=19 // pred_check
          %p144 = pneg %p43
        $region22: #{dhgcn_forward.7} parent=19 // pred_check_branch
          %146 = sbr.rel (%p144) target = $region24
        $region23: #{dhgcn_forward.7} parent=19 // pred_region
          %s147 = sand.u32 %s33, 1
          %s148 = sand.u32 %s33, 1
          %s149 = smul.addr %s148, 128
          %s150 = scalar_lea.vmem [#allocation3], %s149
          %s151 = smul.u32 16, %s16
          %s152 = smul.addr %s151, 3
          %s153 = sadd.s32 %s17, %s152
          %s154 = smul.addr %s153, 8
          %s155 = scalar_lea.vmem %s0, %s154
          // Predicated region
          $region25: #{dhgcn_forward.7} parent=23 // pred_check
            _
          $region26: #{dhgcn_forward.7} parent=23 // pred_check_branch
            %157 = sbr.rel (0) target = $region28
          $region27: #{dhgcn_forward.7} parent=23 // pred_region
            // Predicated region
            $region29: #{dhgcn_forward.7} parent=27 // pred_check
              _
            $region30: #{dhgcn_forward.7} parent=27 // pred_check_branch
              %159 = sbr.rel (0) target = $region32
            $region31: #{dhgcn_forward.7} parent=27 // pred_region
              // Predicated region
              $region44: #{dhgcn_forward.7} parent=31 // pred_check
                _
              $region45: #{dhgcn_forward.7} parent=31 // pred_check_branch
                %205 = sbr.rel (0) target = $region47
              $region46: #{dhgcn_forward.7} parent=31 // pred_region
                loop: start=0, step=1, limit=1
                $region48: #{dhgcn_forward.7} parent=46 // loop_pre_header
                  _
                $region49: #{dhgcn_forward.7} parent=46 // loop_header
                  %s207 = sphi 0, %s211
                  %p208 = scmp.ge.s32.totalorder %s207, 1
                  %s212 = sphi %s155, %s155
                  %s213 = sphi %s150, %s150
                $region50: #{dhgcn_forward.7} parent=46 // loop_header_branch
                  %210 = sbr.rel (%p208) target = $region54
                $region51: #{dhgcn_forward.7} parent=46 // loop_body
                  %v214 = vld [vmem:[%s212] sm:$0xff]
                  %215 = vst [vmem:[%s213] sm:$0xff] %v214
                  %v216 = vld [vmem:[%s212 + $0x18] sm:$0xff]
                  %217 = vst [vmem:[%s213 + $0x8] sm:$0xff] %v216
                  %v218 = vld [vmem:[%s212 + $0x30] sm:$0xff]
                  %219 = vst [vmem:[%s213 + $0x10] sm:$0xff] %v218
                  %v220 = vld [vmem:[%s212 + $0x48] sm:$0xff]
                  %221 = vst [vmem:[%s213 + $0x18] sm:$0xff] %v220
                  %v222 = vld [vmem:[%s212 + $0x60] sm:$0xff]
                  %223 = vst [vmem:[%s213 + $0x20] sm:$0xff] %v222
                  %v224 = vld [vmem:[%s212 + $0x78] sm:$0xff]
                  %225 = vst [vmem:[%s213 + $0x28] sm:$0xff] %v224
                  %v226 = vld [vmem:[%s212 + $0x90] sm:$0xff]
                  %227 = vst [vmem:[%s213 + $0x30] sm:$0xff] %v226
                  %v228 = vld [vmem:[%s212 + $0xa8] sm:$0xff]
                  %229 = vst [vmem:[%s213 + $0x38] sm:$0xff] %v228
                  %v230 = vld [vmem:[%s212 + $0xc0] sm:$0xff]
                  %231 = vst [vmem:[%s213 + $0x40] sm:$0xff] %v230
                  %v232 = vld [vmem:[%s212 + $0xd8] sm:$0xff]
                  %233 = vst [vmem:[%s213 + $0x48] sm:$0xff] %v232
                  %v234 = vld [vmem:[%s212 + $0xf0] sm:$0xff]
                  %235 = vst [vmem:[%s213 + $0x50] sm:$0xff] %v234
                  %v236 = vld [vmem:[%s212 + $0x108] sm:$0xff]
                  %237 = vst [vmem:[%s213 + $0x58] sm:$0xff] %v236
                  %v238 = vld [vmem:[%s212 + $0x120] sm:$0xff]
                  %239 = vst [vmem:[%s213 + $0x60] sm:$0xff] %v238
                  %v240 = vld [vmem:[%s212 + $0x138] sm:$0xff]
                  %241 = vst [vmem:[%s213 + $0x68] sm:$0xff] %v240
                  %v242 = vld [vmem:[%s212 + $0x150] sm:$0xff]
                  %243 = vst [vmem:[%s213 + $0x70] sm:$0xff] %v242
                  %v244 = vld [vmem:[%s212 + $0x168] sm:$0xff]
                  %245 = vst [vmem:[%s213 + $0x78] sm:$0xff] %v244
                $region52: #{dhgcn_forward.7} parent=46 // loop_footer
                  %s211 = sadd.s32 1, %s207
                $region53: #{dhgcn_forward.7} parent=46 // loop_footer_branch
                  %206 = sbr.rel target = $region49
                $region54: #{dhgcn_forward.7} parent=46 // loop_exit
                  _
              $region47: #{dhgcn_forward.7} parent=31 // pred_fallthru
                _
              // Predicated region
              $region55: #{dhgcn_forward.7} parent=31 // pred_check
                _
              $region56: #{dhgcn_forward.7} parent=31 // pred_check_branch
                %247 = sbr.rel target = $region58
              $region57: #{dhgcn_forward.7} parent=31 // pred_region
                _
              $region58: #{dhgcn_forward.7} parent=31 // pred_fallthru
                _
            $region32: #{dhgcn_forward.7} parent=27 // pred_fallthru
              _
            // Predicated region
            $region33: #{dhgcn_forward.7} parent=27 // pred_check
              _
            $region34: #{dhgcn_forward.7} parent=27 // pred_check_branch
              %161 = sbr.rel target = $region36
            $region35: #{dhgcn_forward.7} parent=27 // pred_region
              %s163 = ssub.s32 256, 1
              loop: start=0, step=1, limit=1
              $region37: #{dhgcn_forward.7} parent=35 // loop_pre_header
                _
              $region38: #{dhgcn_forward.7} parent=35 // loop_header
                %s165 = sphi 0, %s169
                %p166 = scmp.ge.s32.totalorder %s165, 1
                %s170 = sphi %s155, %s155
                %s171 = sphi %s150, %s150
              $region39: #{dhgcn_forward.7} parent=35 // loop_header_branch
                %168 = sbr.rel (%p166) target = $region43
              $region40: #{dhgcn_forward.7} parent=35 // loop_body
                %v172 = vld [vmem:[%s170] sm:%s163]
                %173 = vst [vmem:[%s171] sm:%s163] %v172
                %v174 = vld [vmem:[%s170 + $0x18] sm:%s163]
                %175 = vst [vmem:[%s171 + $0x8] sm:%s163] %v174
                %v176 = vld [vmem:[%s170 + $0x30] sm:%s163]
                %177 = vst [vmem:[%s171 + $0x10] sm:%s163] %v176
                %v178 = vld [vmem:[%s170 + $0x48] sm:%s163]
                %179 = vst [vmem:[%s171 + $0x18] sm:%s163] %v178
                %v180 = vld [vmem:[%s170 + $0x60] sm:%s163]
                %181 = vst [vmem:[%s171 + $0x20] sm:%s163] %v180
                %v182 = vld [vmem:[%s170 + $0x78] sm:%s163]
                %183 = vst [vmem:[%s171 + $0x28] sm:%s163] %v182
                %v184 = vld [vmem:[%s170 + $0x90] sm:%s163]
                %185 = vst [vmem:[%s171 + $0x30] sm:%s163] %v184
                %v186 = vld [vmem:[%s170 + $0xa8] sm:%s163]
                %187 = vst [vmem:[%s171 + $0x38] sm:%s163] %v186
                %v188 = vld [vmem:[%s170 + $0xc0] sm:%s163]
                %189 = vst [vmem:[%s171 + $0x40] sm:%s163] %v188
                %v190 = vld [vmem:[%s170 + $0xd8] sm:%s163]
                %191 = vst [vmem:[%s171 + $0x48] sm:%s163] %v190
                %v192 = vld [vmem:[%s170 + $0xf0] sm:%s163]
                %193 = vst [vmem:[%s171 + $0x50] sm:%s163] %v192
                %v194 = vld [vmem:[%s170 + $0x108] sm:%s163]
                %195 = vst [vmem:[%s171 + $0x58] sm:%s163] %v194
                %v196 = vld [vmem:[%s170 + $0x120] sm:%s163]
                %197 = vst [vmem:[%s171 + $0x60] sm:%s163] %v196
                %v198 = vld [vmem:[%s170 + $0x138] sm:%s163]
                %199 = vst [vmem:[%s171 + $0x68] sm:%s163] %v198
                %v200 = vld [vmem:[%s170 + $0x150] sm:%s163]
                %201 = vst [vmem:[%s171 + $0x70] sm:%s163] %v200
                %v202 = vld [vmem:[%s170 + $0x168] sm:%s163]
                %203 = vst [vmem:[%s171 + $0x78] sm:%s163] %v202
              $region41: #{dhgcn_forward.7} parent=35 // loop_footer
                %s169 = sadd.s32 1, %s165
              $region42: #{dhgcn_forward.7} parent=35 // loop_footer_branch
                %164 = sbr.rel target = $region38
              $region43: #{dhgcn_forward.7} parent=35 // loop_exit
                _
            $region36: #{dhgcn_forward.7} parent=27 // pred_fallthru
              _
          $region28: #{dhgcn_forward.7} parent=23 // pred_fallthru
            _
          %248 = vnop
        $region24: #{dhgcn_forward.7} parent=19 // pred_fallthru
          _
        // Predicated region
        $region59: #{dhgcn_forward.7} parent=19 // pred_check
          %p249 = pneg %p69
        $region60: #{dhgcn_forward.7} parent=19 // pred_check_branch
          %251 = sbr.rel (%p249) target = $region62
        $region61: #{dhgcn_forward.7} parent=19 // pred_region
          %s252 = smul.u32 16, %s17
          %p253 = scmp.lt.s32.totalorder %s252, 47
          %s254 = scalar_select %p253, %s252, 47
          %s255 = smul.addr %s254, 8
          %s256 = scalar_lea.vmem %s1, %s255
          %s257 = smul.u32 16, %s17
        $region62: #{dhgcn_forward.7} parent=19 // pred_fallthru
          _
      $region20: #{dhgcn_forward.7} parent=5 // pred_fallthru
        _
      %p258 = scmp.le.s32.totalorder 1, %s9
      %p259 = scmp.lt.s32.totalorder %s9, 10
      %p260 = pnand %p258, %p259
      %p261 = pneg %p260
      // Predicated region
      $region63: #{dhgcn_forward.7} parent=5 // pred_check
        _
      $region64: #{dhgcn_forward.7} parent=5 // pred_check_branch
        %263 = sbr.rel (%p260) target = $region66
      $region65: #{dhgcn_forward.7} parent=5 // pred_region
        %s264 = ssub.s32 %s9, 1
        %s265 = sand.u32 %s36, 1
        %s266 = sand.u32 %s36, 1
        %s267 = smul.addr %s266, 128
        %s268 = scalar_lea.vmem [#allocation3], %s267
        // Predicated region
        $region67: #{dhgcn_forward.7} parent=65 // pred_check
          %p269 = pneg %p49
        $region68: #{dhgcn_forward.7} parent=65 // pred_check_branch
          %271 = sbr.rel (%p269) target = $region70
        $region69: #{dhgcn_forward.7} parent=65 // pred_region
          _
        $region70: #{dhgcn_forward.7} parent=65 // pred_fallthru
          _
        %s272 = sand.u32 %s36, 1
        %s273 = sand.u32 %s36, 1
        %s274 = smul.addr %s273, 128
        %s275 = scalar_lea.vmem [#allocation3], %s274
        %p276 = pneg %p49
        %p277 = pneg %p46
        %s278 = smul.u32 16, %s19
        %p279 = scmp.lt.s32.totalorder %s278, 47
        %s280 = scalar_select %p279, %s278, 47
        %s281 = smul.addr %s280, 8
        %s282 = scalar_lea.vmem %s1, %s281
        %p283 = pneg %p75
        %p284 = pneg %p72
        %p285 = pneg %p96
        %p286 = pneg %p93
        %p287 = pneg %p122
        %p288 = pneg %p119
        %s289 = smul.u32 16, %s18
        %p290 = scmp.lt.s32.totalorder %s289, 47
        %s291 = scalar_select %p290, %s289, 47
        %s292 = smul.addr %s291, 8
        %s293 = scalar_lea.vmem %s3, %s292
        %s294 = smul.u32 16, %s18
        %s295 = smul.u32 16, %s19
        %p296 = scmp.lt.s32.totalorder %s295, 47
        %s297 = scalar_select %p296, %s295, 47
        %s298 = smul.addr %s297, 8
        %s299 = scalar_lea.vmem %s1, %s298
        %s300 = smul.u32 16, %s19
        %s301 = smul.u32 16, %s18
        %p302 = scmp.lt.s32.totalorder %s301, 47
        %s303 = scalar_select %p302, %s301, 47
        %s304 = smul.addr %s303, 8
        %s305 = scalar_lea.vmem %s3, %s304
        %s306 = smul.u32 16, %s18
        %p307 = scmp.eq.s32.totalorder %s19, 0
        // Predicated region
        $region71: #{dhgcn_forward.7} parent=65 // pred_check
          %p308 = pneg %p307
        $region72: #{dhgcn_forward.7} parent=65 // pred_check_branch
          %310 = sbr.rel (%p308) target = $region74
        $region73: #{dhgcn_forward.7} parent=65 // pred_region
          %311 = vst [vmem:[#allocation2] sm:$0xff] 0.0
          %312 = vst [vmem:[#allocation2 + $0x8] sm:$0xff] 0.0
          %313 = vst [vmem:[#allocation2 + $0x10] sm:$0xff] 0.0
          %314 = vst [vmem:[#allocation2 + $0x18] sm:$0xff] 0.0
          %315 = vst [vmem:[#allocation2 + $0x20] sm:$0xff] 0.0
          %316 = vst [vmem:[#allocation2 + $0x28] sm:$0xff] 0.0
          %317 = vst [vmem:[#allocation2 + $0x30] sm:$0xff] 0.0
          %318 = vst [vmem:[#allocation2 + $0x38] sm:$0xff] 0.0
          %319 = vst [vmem:[#allocation2 + $0x40] sm:$0xff] 0.0
          %320 = vst [vmem:[#allocation2 + $0x48] sm:$0xff] 0.0
          %321 = vst [vmem:[#allocation2 + $0x50] sm:$0xff] 0.0
          %322 = vst [vmem:[#allocation2 + $0x58] sm:$0xff] 0.0
          %323 = vst [vmem:[#allocation2 + $0x60] sm:$0xff] 0.0
          %324 = vst [vmem:[#allocation2 + $0x68] sm:$0xff] 0.0
          %325 = vst [vmem:[#allocation2 + $0x70] sm:$0xff] 0.0
          %326 = vst [vmem:[#allocation2 + $0x78] sm:$0xff] 0.0
        $region74: #{dhgcn_forward.7} parent=65 // pred_fallthru
          _
        %v327 = vld [vmem:[#allocation2] sm:$0xff]
        %v328 = vld [vmem:[#allocation2 + $0x8] sm:$0xff]
        %v329 = vld [vmem:[#allocation2 + $0x10] sm:$0xff]
        %v330 = vld [vmem:[#allocation2 + $0x18] sm:$0xff]
        %v331 = vld [vmem:[#allocation2 + $0x20] sm:$0xff]
        %v332 = vld [vmem:[#allocation2 + $0x28] sm:$0xff]
        %v333 = vld [vmem:[#allocation2 + $0x30] sm:$0xff]
        %v334 = vld [vmem:[#allocation2 + $0x38] sm:$0xff]
        %v335 = vld [vmem:[#allocation2 + $0x40] sm:$0xff]
        %v336 = vld [vmem:[#allocation2 + $0x48] sm:$0xff]
        %v337 = vld [vmem:[#allocation2 + $0x50] sm:$0xff]
        %v338 = vld [vmem:[#allocation2 + $0x58] sm:$0xff]
        %v339 = vld [vmem:[#allocation2 + $0x60] sm:$0xff]
        %v340 = vld [vmem:[#allocation2 + $0x68] sm:$0xff]
        %v341 = vld [vmem:[#allocation2 + $0x70] sm:$0xff]
        %v342 = vld [vmem:[#allocation2 + $0x78] sm:$0xff]
        %v343 = vld [vmem:[%s268] sm:$0xff]
        %v344 = vld [vmem:[%s268 + $0x8] sm:$0xff]
        %v345 = vld [vmem:[%s268 + $0x10] sm:$0xff]
        %v346 = vld [vmem:[%s268 + $0x18] sm:$0xff]
        %v347 = vld [vmem:[%s268 + $0x20] sm:$0xff]
        %v348 = vld [vmem:[%s268 + $0x28] sm:$0xff]
        %v349 = vld [vmem:[%s268 + $0x30] sm:$0xff]
        %v350 = vld [vmem:[%s268 + $0x38] sm:$0xff]
        %v351 = vld [vmem:[%s268 + $0x40] sm:$0xff]
        %v352 = vld [vmem:[%s268 + $0x48] sm:$0xff]
        %v353 = vld [vmem:[%s268 + $0x50] sm:$0xff]
        %v354 = vld [vmem:[%s268 + $0x58] sm:$0xff]
        %v355 = vld [vmem:[%s268 + $0x60] sm:$0xff]
        %v356 = vld [vmem:[%s268 + $0x68] sm:$0xff]
        %v357 = vld [vmem:[%s268 + $0x70] sm:$0xff]
        %v358 = vld [vmem:[%s268 + $0x78] sm:$0xff]
        %v359 = vld [vmem:[%s299] sm:$0xff]
        %v360 = vld [vmem:[%s299 + $0x8] sm:$0xff]
        %v361 = vld [vmem:[%s299 + $0x10] sm:$0xff]
        %v362 = vld [vmem:[%s299 + $0x18] sm:$0xff]
        %v363 = vld [vmem:[%s299 + $0x20] sm:$0xff]
        %v364 = vld [vmem:[%s299 + $0x28] sm:$0xff]
        %v365 = vld [vmem:[%s299 + $0x30] sm:$0xff]
        %v366 = vld [vmem:[%s299 + $0x38] sm:$0xff]
        %v367 = vld [vmem:[%s299 + $0x40] sm:$0xff]
        %v368 = vld [vmem:[%s299 + $0x48] sm:$0xff]
        %v369 = vld [vmem:[%s299 + $0x50] sm:$0xff]
        %v370 = vld [vmem:[%s299 + $0x58] sm:$0xff]
        %v371 = vld [vmem:[%s299 + $0x60] sm:$0xff]
        %v372 = vld [vmem:[%s299 + $0x68] sm:$0xff]
        %v373 = vld [vmem:[%s299 + $0x70] sm:$0xff]
        %v374 = vld [vmem:[%s299 + $0x78] sm:$0xff]
        %375 = vmatprep.subr.mxu0 0.0
        %376 = vmatpush1.msra.mxu0 %v374
        %377 = vmatprep.subr.mxu0 0.0
        %378 = vmatpush1.msra.mxu0 %v373
        %379 = vmatprep.subr.mxu0 0.0
        %380 = vmatpush1.msra.mxu0 %v372
        %381 = vmatprep.subr.mxu0 0.0
        %382 = vmatpush1.msra.mxu0 %v371
        %383 = vmatprep.subr.mxu0 0.0
        %384 = vmatpush1.msra.mxu0 %v370
        %385 = vmatprep.subr.mxu0 0.0
        %386 = vmatpush1.msra.mxu0 %v369
        %387 = vmatprep.subr.mxu0 0.0
        %388 = vmatpush1.msra.mxu0 %v368
        %389 = vmatprep.subr.mxu0 0.0
        %390 = vmatpush1.msra.mxu0 %v367
        %391 = vmatprep.subr.mxu0 0.0
        %392 = vmatpush1.msra.mxu0 %v366
        %393 = vmatprep.subr.mxu0 0.0
        %394 = vmatpush1.msra.mxu0 %v365
        %395 = vmatprep.subr.mxu0 0.0
        %396 = vmatpush1.msra.mxu0 %v364
        %397 = vmatprep.subr.mxu0 0.0
        %398 = vmatpush1.msra.mxu0 %v363
        %399 = vmatprep.subr.mxu0 0.0
        %400 = vmatpush1.msra.mxu0 %v362
        %401 = vmatprep.subr.mxu0 0.0
        %402 = vmatpush1.msra.mxu0 %v361
        %403 = vmatprep.subr.mxu0 0.0
        %404 = vmatpush1.msra.mxu0 %v360
        %405 = vmatprep.subr.mxu0 0.0
        %406 = vmatpush1.msra.mxu0 %v359
        %407 = vmatprep.subr.mxu0 0.0
        %408 = vmatpush2.msra.mxu0 0.0
        %409 = vmatprep.subr.mxu0 0.0
        %410 = vmatpush2.msra.mxu0 0.0
        %411 = vmatprep.subr.mxu0 0.0
        %412 = vmatpush2.msra.mxu0 0.0
        %413 = vmatprep.subr.mxu0 0.0
        %414 = vmatpush2.msra.mxu0 0.0
        %415 = vmatprep.subr.mxu0 0.0
        %416 = vmatpush2.msra.mxu0 0.0
        %417 = vmatprep.subr.mxu0 0.0
        %418 = vmatpush2.msra.mxu0 0.0
        %419 = vmatprep.subr.mxu0 0.0
        %420 = vmatpush2.msra.mxu0 0.0
        %421 = vmatprep.subr.mxu0 0.0
        %422 = vmatpush2.msra.mxu0 0.0
        %423 = vmatprep.subr.mxu0 0.0
        %424 = vmatpush2.msra.mxu0 0.0
        %425 = vmatprep.subr.mxu0 0.0
        %426 = vmatpush2.msra.mxu0 0.0
        %427 = vmatprep.subr.mxu0 0.0
        %428 = vmatpush2.msra.mxu0 0.0
        %429 = vmatprep.subr.mxu0 0.0
        %430 = vmatpush2.msra.mxu0 0.0
        %431 = vmatprep.subr.mxu0 0.0
        %432 = vmatpush2.msra.mxu0 0.0
        %433 = vmatprep.subr.mxu0 0.0
        %434 = vmatpush2.msra.mxu0 0.0
        %435 = vmatprep.subr.mxu0 0.0
        %436 = vmatpush2.msra.mxu0 0.0
        %437 = vmatprep.subr.mxu0 0.0
        %438 = vmatpush2.msra.mxu0 0.0
        %439 = vmatprep.mubr.f32.mxu0 0.0
        %440 = vmatmul.mubr.f32.gmra.mxu0 %v343
        %v441 = vpop.f32.mrf.mxu0
        %v442 = vadd.f32 0.0, %v441
        %v443 = vpop.f32.mrf.mxu0
        %444 = vmatprep.mubr.f32.mxu0 0.0
        %445 = vmatmul.mubr.f32.gmra.mxu0 %v344
        %v446 = vpop.f32.mrf.mxu0
        %v447 = vadd.f32 0.0, %v446
        %v448 = vpop.f32.mrf.mxu0
        %449 = vmatprep.mubr.f32.mxu0 0.0
        %450 = vmatmul.mubr.f32.gmra.mxu0 %v345
        %v451 = vpop.f32.mrf.mxu0
        %v452 = vadd.f32 0.0, %v451
        %v453 = vpop.f32.mrf.mxu0
        %454 = vmatprep.mubr.f32.mxu0 0.0
        %455 = vmatmul.mubr.f32.gmra.mxu0 %v346
        %v456 = vpop.f32.mrf.mxu0
        %v457 = vadd.f32 0.0, %v456
        %v458 = vpop.f32.mrf.mxu0
        %459 = vmatprep.mubr.f32.mxu0 0.0
        %460 = vmatmul.mubr.f32.gmra.mxu0 %v347
        %v461 = vpop.f32.mrf.mxu0
        %v462 = vadd.f32 0.0, %v461
        %v463 = vpop.f32.mrf.mxu0
        %464 = vmatprep.mubr.f32.mxu0 0.0
        %465 = vmatmul.mubr.f32.gmra.mxu0 %v348
        %v466 = vpop.f32.mrf.mxu0
        %v467 = vadd.f32 0.0, %v466
        %v468 = vpop.f32.mrf.mxu0
        %469 = vmatprep.mubr.f32.mxu0 0.0
        %470 = vmatmul.mubr.f32.gmra.mxu0 %v349
        %v471 = vpop.f32.mrf.mxu0
        %v472 = vadd.f32 0.0, %v471
        %v473 = vpop.f32.mrf.mxu0
        %474 = vmatprep.mubr.f32.mxu0 0.0
        %475 = vmatmul.mubr.f32.gmra.mxu0 %v350
        %v476 = vpop.f32.mrf.mxu0
        %v477 = vadd.f32 0.0, %v476
        %v478 = vpop.f32.mrf.mxu0
        %479 = vmatprep.mubr.f32.mxu0 0.0
        %480 = vmatmul.mubr.f32.gmra.mxu0 %v351
        %v481 = vpop.f32.mrf.mxu0
        %v482 = vadd.f32 0.0, %v481
        %v483 = vpop.f32.mrf.mxu0
        %484 = vmatprep.mubr.f32.mxu0 0.0
        %485 = vmatmul.mubr.f32.gmra.mxu0 %v352
        %v486 = vpop.f32.mrf.mxu0
        %v487 = vadd.f32 0.0, %v486
        %v488 = vpop.f32.mrf.mxu0
        %489 = vmatprep.mubr.f32.mxu0 0.0
        %490 = vmatmul.mubr.f32.gmra.mxu0 %v353
        %v491 = vpop.f32.mrf.mxu0
        %v492 = vadd.f32 0.0, %v491
        %v493 = vpop.f32.mrf.mxu0
        %494 = vmatprep.mubr.f32.mxu0 0.0
        %495 = vmatmul.mubr.f32.gmra.mxu0 %v354
        %v496 = vpop.f32.mrf.mxu0
        %v497 = vadd.f32 0.0, %v496
        %v498 = vpop.f32.mrf.mxu0
        %499 = vmatprep.mubr.f32.mxu0 0.0
        %500 = vmatmul.mubr.f32.gmra.mxu0 %v355
        %v501 = vpop.f32.mrf.mxu0
        %v502 = vadd.f32 0.0, %v501
        %v503 = vpop.f32.mrf.mxu0
        %504 = vmatprep.mubr.f32.mxu0 0.0
        %505 = vmatmul.mubr.f32.gmra.mxu0 %v356
        %v506 = vpop.f32.mrf.mxu0
        %v507 = vadd.f32 0.0, %v506
        %v508 = vpop.f32.mrf.mxu0
        %509 = vmatprep.mubr.f32.mxu0 0.0
        %510 = vmatmul.mubr.f32.gmra.mxu0 %v357
        %v511 = vpop.f32.mrf.mxu0
        %v512 = vadd.f32 0.0, %v511
        %v513 = vpop.f32.mrf.mxu0
        %514 = vmatprep.mubr.f32.mxu0 0.0
        %515 = vmatmul.mubr.f32.gmra.mxu0 %v358
        %v516 = vpop.f32.mrf.mxu0
        %v517 = vadd.f32 0.0, %v516
        %v518 = vpop.f32.mrf.mxu0
        %519 = vdwg.mxu0
        %v520 = vadd.f32 %v327, %v442
        %v521 = vadd.f32 %v328, %v447
        %v522 = vadd.f32 %v329, %v452
        %v523 = vadd.f32 %v330, %v457
        %v524 = vadd.f32 %v331, %v462
        %v525 = vadd.f32 %v332, %v467
        %v526 = vadd.f32 %v333, %v472
        %v527 = vadd.f32 %v334, %v477
        %v528 = vadd.f32 %v335, %v482
        %v529 = vadd.f32 %v336, %v487
        %v530 = vadd.f32 %v337, %v492
        %v531 = vadd.f32 %v338, %v497
        %v532 = vadd.f32 %v339, %v502
        %v533 = vadd.f32 %v340, %v507
        %v534 = vadd.f32 %v341, %v512
        %v535 = vadd.f32 %v342, %v517
        %536 = vst [vmem:[#allocation2] sm:$0xff] %v520
        %537 = vst [vmem:[#allocation2 + $0x8] sm:$0xff] %v521
        %538 = vst [vmem:[#allocation2 + $0x10] sm:$0xff] %v522
        %539 = vst [vmem:[#allocation2 + $0x18] sm:$0xff] %v523
        %540 = vst [vmem:[#allocation2 + $0x20] sm:$0xff] %v524
        %541 = vst [vmem:[#allocation2 + $0x28] sm:$0xff] %v525
        %542 = vst [vmem:[#allocation2 + $0x30] sm:$0xff] %v526
        %543 = vst [vmem:[#allocation2 + $0x38] sm:$0xff] %v527
        %544 = vst [vmem:[#allocation2 + $0x40] sm:$0xff] %v528
        %545 = vst [vmem:[#allocation2 + $0x48] sm:$0xff] %v529
        %546 = vst [vmem:[#allocation2 + $0x50] sm:$0xff] %v530
        %547 = vst [vmem:[#allocation2 + $0x58] sm:$0xff] %v531
        %548 = vst [vmem:[#allocation2 + $0x60] sm:$0xff] %v532
        %549 = vst [vmem:[#allocation2 + $0x68] sm:$0xff] %v533
        %550 = vst [vmem:[#allocation2 + $0x70] sm:$0xff] %v534
        %551 = vst [vmem:[#allocation2 + $0x78] sm:$0xff] %v535
        %p552 = scmp.eq.s32.totalorder %s19, 2
        // Predicated region
        $region75: #{dhgcn_forward.7} parent=65 // pred_check
          %p553 = pneg %p552
        $region76: #{dhgcn_forward.7} parent=65 // pred_check_branch
          %555 = sbr.rel (%p553) target = $region78
        $region77: #{dhgcn_forward.7} parent=65 // pred_region
          %v556 = vld [vmem:[#allocation2] sm:$0xff]
          %v557 = vld [vmem:[#allocation2 + $0x8] sm:$0xff]
          %v558 = vld [vmem:[#allocation2 + $0x10] sm:$0xff]
          %v559 = vld [vmem:[#allocation2 + $0x18] sm:$0xff]
          %v560 = vld [vmem:[#allocation2 + $0x20] sm:$0xff]
          %v561 = vld [vmem:[#allocation2 + $0x28] sm:$0xff]
          %v562 = vld [vmem:[#allocation2 + $0x30] sm:$0xff]
          %v563 = vld [vmem:[#allocation2 + $0x38] sm:$0xff]
          %v564 = vld [vmem:[#allocation2 + $0x40] sm:$0xff]
          %v565 = vld [vmem:[#allocation2 + $0x48] sm:$0xff]
          %v566 = vld [vmem:[#allocation2 + $0x50] sm:$0xff]
          %v567 = vld [vmem:[#allocation2 + $0x58] sm:$0xff]
          %v568 = vld [vmem:[#allocation2 + $0x60] sm:$0xff]
          %v569 = vld [vmem:[#allocation2 + $0x68] sm:$0xff]
          %v570 = vld [vmem:[#allocation2 + $0x70] sm:$0xff]
          %v571 = vld [vmem:[#allocation2 + $0x78] sm:$0xff]
          %v572 = vld [vmem:[%s2] sm:$0x1]
          %v574 = vlaneseq
          %v575 = vshrl.u32 %v574, 7
          %v576 = vsub.s32 0, %v575
          %v577 = vrot.slane %v572, %v576
          %v579 = vadd.f32 %v556, %v577
          %v580 = vadd.f32 %v557, %v577
          %v581 = vadd.f32 %v558, %v577
          %v582 = vadd.f32 %v559, %v577
          %v583 = vadd.f32 %v560, %v577
          %v584 = vadd.f32 %v561, %v577
          %v585 = vadd.f32 %v562, %v577
          %v586 = vadd.f32 %v563, %v577
          %v587 = vadd.f32 %v564, %v577
          %v588 = vadd.f32 %v565, %v577
          %v589 = vadd.f32 %v566, %v577
          %v590 = vadd.f32 %v567, %v577
          %v591 = vadd.f32 %v568, %v577
          %v592 = vadd.f32 %v569, %v577
          %v593 = vadd.f32 %v570, %v577
          %v594 = vadd.f32 %v571, %v577
          %v595 = vmax.f32 %v579, 0.0
          %v596 = vmax.f32 %v580, 0.0
          %v597 = vmax.f32 %v581, 0.0
          %v598 = vmax.f32 %v582, 0.0
          %v599 = vmax.f32 %v583, 0.0
          %v600 = vmax.f32 %v584, 0.0
          %v601 = vmax.f32 %v585, 0.0
          %v602 = vmax.f32 %v586, 0.0
          %v603 = vmax.f32 %v587, 0.0
          %v604 = vmax.f32 %v588, 0.0
          %v605 = vmax.f32 %v589, 0.0
          %v606 = vmax.f32 %v590, 0.0
          %v607 = vmax.f32 %v591, 0.0
          %v608 = vmax.f32 %v592, 0.0
          %v609 = vmax.f32 %v593, 0.0
          %v610 = vmax.f32 %v594, 0.0
          %611 = vst [vmem:[%s305] sm:$0xff] %v595
          %612 = vst [vmem:[%s305 + $0x8] sm:$0xff] %v596
          %613 = vst [vmem:[%s305 + $0x10] sm:$0xff] %v597
          %614 = vst [vmem:[%s305 + $0x18] sm:$0xff] %v598
          %615 = vst [vmem:[%s305 + $0x20] sm:$0xff] %v599
          %616 = vst [vmem:[%s305 + $0x28] sm:$0xff] %v600
          %617 = vst [vmem:[%s305 + $0x30] sm:$0xff] %v601
          %618 = vst [vmem:[%s305 + $0x38] sm:$0xff] %v602
          %619 = vst [vmem:[%s305 + $0x40] sm:$0xff] %v603
          %620 = vst [vmem:[%s305 + $0x48] sm:$0xff] %v604
          %621 = vst [vmem:[%s305 + $0x50] sm:$0xff] %v605
          %622 = vst [vmem:[%s305 + $0x58] sm:$0xff] %v606
          %623 = vst [vmem:[%s305 + $0x60] sm:$0xff] %v607
          %624 = vst [vmem:[%s305 + $0x68] sm:$0xff] %v608
          %625 = vst [vmem:[%s305 + $0x70] sm:$0xff] %v609
          %626 = vst [vmem:[%s305 + $0x78] sm:$0xff] %v610
        $region78: #{dhgcn_forward.7} parent=65 // pred_fallthru
          _
        %s627 = smul.u32 16, %s18
        %p628 = scmp.lt.s32.totalorder %s627, 47
        %s629 = scalar_select %p628, %s627, 47
        %s630 = smul.addr %s629, 8
        %s631 = scalar_lea.vmem %s3, %s630
        // Predicated region
        $region79: #{dhgcn_forward.7} parent=65 // pred_check
          %p632 = pneg %p119
        $region80: #{dhgcn_forward.7} parent=65 // pred_check_branch
          %634 = sbr.rel (%p632) target = $region82
        $region81: #{dhgcn_forward.7} parent=65 // pred_region
          %s635 = smul.u32 16, %s18
        $region82: #{dhgcn_forward.7} parent=65 // pred_fallthru
          _
      $region66: #{dhgcn_forward.7} parent=5 // pred_fallthru
        _
      %p636 = scmp.le.s32.totalorder 2, %s9
      // Predicated region
      $region83: #{dhgcn_forward.7} parent=5 // pred_check
        %p637 = pneg %p636
      $region84: #{dhgcn_forward.7} parent=5 // pred_check_branch
        %639 = sbr.rel (%p637) target = $region86
      $region85: #{dhgcn_forward.7} parent=5 // pred_region
        %s640 = ssub.s32 %s9, 2
        // Predicated region
        $region87: #{dhgcn_forward.7} parent=85 // pred_check
          %p641 = pneg %p125
        $region88: #{dhgcn_forward.7} parent=85 // pred_check_branch
          %643 = sbr.rel (%p641) target = $region90
        $region89: #{dhgcn_forward.7} parent=85 // pred_region
          %s644 = smul.u32 16, %s20
          %p645 = scmp.lt.s32.totalorder %s644, 47
          %s646 = scalar_select %p645, %s644, 47
          %s647 = smul.addr %s646, 8
          %s648 = scalar_lea.vmem %s3, %s647
        $region90: #{dhgcn_forward.7} parent=85 // pred_fallthru
          _
      $region86: #{dhgcn_forward.7} parent=5 // pred_fallthru
        _
    $region6: #{dhgcn_forward.7} parent=1 // loop_footer
      %s13 = sadd.s32 1, %s9
    $region7: #{dhgcn_forward.7} parent=1 // loop_footer_branch
      %8 = sbr.rel target = $region3
    $region8: #{dhgcn_forward.7} parent=1 // loop_exit
      _

</llo_original>
